<compile_context>
chip_gen: v6e
topology: v6e:2x2x1
jax: 0.10.0
libtpu: 0.0.40
codegen_flags: <defaults>
</compile_context>

<pallas_src>
import functools

import jax
import jax.numpy as jnp
from jax import lax
from jax.experimental import pallas as pl
from jax.experimental.pallas import tpu as pltpu


# ---------------------------------------------------------------------------
# helpers
# ---------------------------------------------------------------------------
def _full(shape):
    # whole-array block, single kernel invocation (grid = ()) -- only for the tiny CRF kernel
    return pl.BlockSpec(shape, lambda: (0,) * len(shape))


def _pick_tile(dim, target, aligns):
    """Largest tile <= target that divides `dim` and is a multiple of one of `aligns`
    (tried in order).  Falls back to the full dim (see TODO at top of file)."""
    if dim <= target:
        return dim
    for a in aligns:
        t = (target // a) * a
        while t >= a:
            if dim % t == 0:
                return t
            t -= a
    return dim


def _clamp_vmem(per_step_bytes):
    # 2x headroom over the double-buffered per-step working set; raise above v5e's 16 MiB scoped
    # default, stay well inside v7x's 64 MiB physical VMEM.
    return int(min(max(2 * per_step_bytes, 32 << 20), 48 << 20))


def _layer_norm(y, g, b, eps):
    mu = jnp.mean(y, axis=-1, keepdims=True)
    var = jnp.mean((y - mu) ** 2, axis=-1, keepdims=True)
    return (y - mu) * lax.rsqrt(var + eps) * g + b


_DENSE_SEM = ("parallel", "parallel", "arbitrary")


# ---------------------------------------------------------------------------
# tiled dense kernels (MXU matmul + fused epilogue)
#   plain / gelu :  o = act(x @ w + b)
#   ln           :  o = LayerNorm(x @ w + b + residual) * gamma + beta
#   ln + cls     :  logits = LN(...) @ cls_w + cls_b      (BertLayer output never hits HBM)
# ---------------------------------------------------------------------------
def _dense_kernel(x_ref, w_ref, b_ref, o_ref, acc_ref, *, act):
    @pl.when(pl.program_id(2) == 0)
    def _init():
        acc_ref[...] = jnp.zeros_like(acc_ref)

    acc_ref[...] += jnp.dot(x_ref[...], w_ref[...],
                            preferred_element_type=jnp.float32)

    @pl.when(pl.program_id(2) == pl.num_programs(2) - 1)
    def _fin():
        y = acc_ref[...] + b_ref[...].astype(jnp.float32)
        if act == "gelu":
            # tanh-approx GELU (EUP tanh hides under MXU work)
            y = 0.5 * y * (1.0 + jnp.tanh(0.7978845608028654 *
                                          (y + 0.044715 * y * y * y)))
        o_ref[...] = y.astype(o_ref.dtype)


def _dense_ln_kernel(x_ref, w_ref, b_ref, r_ref, g_ref, be_ref, o_ref, acc_ref, *, eps):
    @pl.when(pl.program_id(2) == 0)
    def _init():
        acc_ref[...] = jnp.zeros_like(acc_ref)

    acc_ref[...] += jnp.dot(x_ref[...], w_ref[...],
                            preferred_element_type=jnp.float32)

    @pl.when(pl.program_id(2) == pl.num_programs(2) - 1)
    def _fin():
        y = (acc_ref[...] + b_ref[...].astype(jnp.float32)
             + r_ref[...].astype(jnp.float32))
        h = _layer_norm(y, g_ref[...].astype(jnp.float32),
                        be_ref[...].astype(jnp.float32), eps)
        o_ref[...] = h.astype(o_ref.dtype)


def _dense_ln_cls_kernel(x_ref, w_ref, b_ref, r_ref, g_ref, be_ref, cw_ref, cb_ref,
                         logits_ref, acc_ref, *, eps):
    @pl.when(pl.program_id(2) == 0)
    def _init():
        acc_ref[...] = jnp.zeros_like(acc_ref)

    acc_ref[...] += jnp.dot(x_ref[...], w_ref[...],
                            preferred_element_type=jnp.float32)

    @pl.when(pl.program_id(2) == pl.num_programs(2) - 1)
    def _fin():
        y = (acc_ref[...] + b_ref[...].astype(jnp.float32)
             + r_ref[...].astype(jnp.float32))
        h = _layer_norm(y, g_ref[...].astype(jnp.float32),
                        be_ref[...].astype(jnp.float32), eps)
        # classifier fused into the epilogue: the normalized row is live here, L is lane-padded
        logits_ref[...] = (jnp.dot(h.astype(cw_ref.dtype), cw_ref[...],
                                   preferred_element_type=jnp.float32)
                           + cb_ref[...].astype(jnp.float32)).astype(logits_ref.dtype)


def dense(x, w, b, act=None, out_dtype=jnp.bfloat16,
          tm_target=512, tn_target=512, tk_target=512):
    M, K = x.shape
    N = w.shape[1]
    tm = _pick_tile(M, tm_target, (256, 128, 16, 8))
    tn = _pick_tile(N, tn_target, (512, 256, 128))
    tk = _pick_tile(K, tk_target, (512, 256, 128))
    grid = (M // tm, N // tn, K // tk)

    per_step = (2 * (tm * tk + tk * tn) * x.dtype.itemsize
                + 2 * tn * 4
                + 2 * tm * tn * jnp.dtype(out_dtype).itemsize
                + tm * tn * 4)

    return pl.pallas_call(
        functools.partial(_dense_kernel, act=act),
        out_shape=jax.ShapeDtypeStruct((M, N), out_dtype),
        grid_spec=pltpu.PrefetchScalarGridSpec(
            num_scalar_prefetch=0, grid=grid,
            in_specs=[pl.BlockSpec((tm, tk), lambda i, j, k: (i, k)),
                      pl.BlockSpec((tk, tn), lambda i, j, k: (k, j)),
                      pl.BlockSpec((1, tn), lambda i, j, k: (0, j))],
            out_specs=pl.BlockSpec((tm, tn), lambda i, j, k: (i, j)),
            scratch_shapes=[pltpu.VMEM((tm, tn), jnp.float32)]),
        compiler_params=pltpu.CompilerParams(
            dimension_semantics=_DENSE_SEM,
            vmem_limit_bytes=_clamp_vmem(per_step)),
    )(x, w, b.reshape(1, N))


def dense_ln(x, w, b, residual, gamma, beta, out_dtype=jnp.bfloat16, eps=1e-12,
             tm_target=512, tk_target=512):
    M, K = x.shape
    N = w.shape[1]
    tm = _pick_tile(M, tm_target, (256, 128, 16, 8))
    tk = _pick_tile(K, tk_target, (512, 256, 128))
    tn = N                      # LayerNorm needs the full row in one tile
    grid = (M // tm, 1, K // tk)

    per_step = (2 * (tm * tk + tk * tn) * x.dtype.itemsize
                + 2 * tm * tn * residual.dtype.itemsize
                + 3 * 2 * tn * 4
                + 2 * tm * tn * jnp.dtype(out_dtype).itemsize
                + tm * tn * 4)

    return pl.pallas_call(
        functools.partial(_dense_ln_kernel, eps=eps),
        out_shape=jax.ShapeDtypeStruct((M, N), out_dtype),
        grid_spec=pltpu.PrefetchScalarGridSpec(
            num_scalar_prefetch=0, grid=grid,
            in_specs=[pl.BlockSpec((tm, tk), lambda i, j, k: (i, k)),
                      pl.BlockSpec((tk, tn), lambda i, j, k: (k, j)),
                      pl.BlockSpec((1, tn), lambda i, j, k: (0, j)),
                      pl.BlockSpec((tm, tn), lambda i, j, k: (i, j)),
                      pl.BlockSpec((1, tn), lambda i, j, k: (0, j)),
                      pl.BlockSpec((1, tn), lambda i, j, k: (0, j))],
            out_specs=pl.BlockSpec((tm, tn), lambda i, j, k: (i, j)),
            scratch_shapes=[pltpu.VMEM((tm, tn), jnp.float32)]),
        compiler_params=pltpu.CompilerParams(
            dimension_semantics=_DENSE_SEM,
            vmem_limit_bytes=_clamp_vmem(per_step)),
    )(x, w, b.reshape(1, N), residual, gamma.reshape(1, N), beta.reshape(1, N))


def dense_ln_cls(x, w, b, residual, gamma, beta, cls_w, cls_b, eps=1e-12,
                 tm_target=512, tk_target=512):
    """FF2 matmul + bias + residual + LayerNorm + classifier, logits-only output (f32, lane-padded)."""
    M, K = x.shape
    N = w.shape[1]
    Lp = cls_w.shape[1]
    tm = _pick_tile(M, tm_target, (256, 128, 16, 8))
    tk = _pick_tile(K, tk_target, (512, 256, 128))
    tn = N                      # LayerNorm + classifier need the full row
    grid = (M // tm, 1, K // tk)

    per_step = (2 * (tm * tk + tk * tn) * x.dtype.itemsize
                + 2 * tm * tn * residual.dtype.itemsize
                + 3 * 2 * tn * 4
                + 2 * (tn * Lp * cls_w.dtype.itemsize + Lp * 4 + tm * Lp * 4)
                + tm * tn * 4)

    return pl.pallas_call(
        functools.partial(_dense_ln_cls_kernel, eps=eps),
        out_shape=jax.ShapeDtypeStruct((M, Lp), jnp.float32),
        grid_spec=pltpu.PrefetchScalarGridSpec(
            num_scalar_prefetch=0, grid=grid,
            in_specs=[pl.BlockSpec((tm, tk), lambda i, j, k: (i, k)),
                      pl.BlockSpec((tk, tn), lambda i, j, k: (k, j)),
                      pl.BlockSpec((1, tn), lambda i, j, k: (0, j)),
                      pl.BlockSpec((tm, tn), lambda i, j, k: (i, j)),
                      pl.BlockSpec((1, tn), lambda i, j, k: (0, j)),
                      pl.BlockSpec((1, tn), lambda i, j, k: (0, j)),
                      pl.BlockSpec((tn, Lp), lambda i, j, k: (j, 0)),
                      pl.BlockSpec((1, Lp), lambda i, j, k: (0, 0))],
            out_specs=pl.BlockSpec((tm, Lp), lambda i, j, k: (i, 0)),
            scratch_shapes=[pltpu.VMEM((tm, tn), jnp.float32)]),
        compiler_params=pltpu.CompilerParams(
            dimension_semantics=_DENSE_SEM,
            vmem_limit_bytes=_clamp_vmem(per_step)),
    )(x, w, b.reshape(1, N), residual, gamma.reshape(1, N), beta.reshape(1, N),
      cls_w, cls_b)


# ---------------------------------------------------------------------------
# multi-head self-attention kernel, grid = (batch, heads)
#   qkv5: (3, B, heads, S, Dh) head-major layout -> per-head q/k/v are leading-axis blocks
#   mask: (B, 1, S) 0/1 attention mask -> additive mask built in-kernel
# ---------------------------------------------------------------------------
def _attn_head_kernel(q_ref, k_ref, v_ref, m_ref, o_ref, *, scale):
    q = q_ref[0, 0, 0]                                   # (S, Dh) bf16
    k = k_ref[0, 0, 0]
    v = v_ref[0, 0, 0]
    neg = (1.0 - m_ref[0].astype(jnp.float32)) * -10000.0    # (1, S) additive key mask

    s = lax.dot_general(q, k, (((1,), (1,)), ((), ())),
                        preferred_element_type=jnp.float32) * scale   # (S, S) = q @ k.T
    s = s + neg
    s = s - jnp.max(s, axis=-1, keepdims=True)
    p = jnp.exp(s)
    p = p * pl.reciprocal(jnp.sum(p, axis=-1, keepdims=True), approx=True)
    ctx = jnp.dot(p.astype(v.dtype), v,
                  preferred_element_type=jnp.float32)     # (S, Dh)
    o_ref[0, 0] = ctx.astype(o_ref.dtype)


def attention(qkv5, mask_b1s, out_dtype=jnp.bfloat16):
    _, B, num_heads, S, Dh = qkv5.shape
    scale = 1.0 / (Dh ** 0.5)
    blk = (1, 1, 1, S, Dh)
    per_step = (2 * 3 * S * Dh * qkv5.dtype.itemsize
                + 2 * S * Dh * jnp.dtype(out_dtype).itemsize
                + 2 * S * 4
                + S * S * 4)
    return pl.pallas_call(
        functools.partial(_attn_head_kernel, scale=scale),
        out_shape=jax.ShapeDtypeStruct((B, num_heads, S, Dh), out_dtype),
        grid_spec=pltpu.PrefetchScalarGridSpec(
            num_scalar_prefetch=0, grid=(B, num_heads),
            in_specs=[pl.BlockSpec(blk, lambda b, h: (0, b, h, 0, 0)),
                      pl.BlockSpec(blk, lambda b, h: (1, b, h, 0, 0)),
                      pl.BlockSpec(blk, lambda b, h: (2, b, h, 0, 0)),
                      pl.BlockSpec((1, 1, S), lambda b, h: (b, 0, 0))],
            out_specs=pl.BlockSpec((1, 1, S, Dh), lambda b, h: (b, h, 0, 0))),
        compiler_params=pltpu.CompilerParams(
            dimension_semantics=("parallel", "parallel"),
            vmem_limit_bytes=_clamp_vmem(per_step)),
    )(qkv5, qkv5, qkv5, mask_b1s)


# ---------------------------------------------------------------------------
# linear-chain CRF log-likelihood kernel (gold-path score minus log-partition)
# emissions / one-hot labels: (S, B, L) f32, transitions (L, L), start/end (1, L)
# output: (B, 1) per-sequence log-likelihood
# ---------------------------------------------------------------------------
def _crf_kernel(emit_ref, oh_ref, trans_ref, start_ref, end_ref, out_ref):
    emit = emit_ref[...]     # (S, B, L)
    oh = oh_ref[...]         # (S, B, L)
    trans = trans_ref[...]   # (L, L)
    start = start_ref[...]   # (1, L)
    end = end_ref[...]       # (1, L)
    S, Bb, L = emit.shape

    # ---- gold (numerator) path score ----
    emit_score = jnp.sum(jnp.sum(emit * oh, axis=0), axis=-1, keepdims=True)       # (B,1)
    # transition score via small matmul (no (S-1,B,L,L) outer-product intermediate)
    prev2 = oh[:-1].reshape((S - 1) * Bb, L)
    nxt = oh[1:]                                                                   # (S-1,B,L)
    row = jnp.dot(prev2, trans,
                  preferred_element_type=jnp.float32).reshape(S - 1, Bb, L)
    trans_score = jnp.sum(jnp.sum(row * nxt, axis=0), axis=-1, keepdims=True)      # (B,1)
    start_score = jnp.sum(oh[0] * start, axis=-1, keepdims=True)                   # (B,1)
    end_score = jnp.sum(oh[-1] * end, axis=-1, keepdims=True)                      # (B,1)
    gold = emit_score + trans_score + start_score + end_score                      # (B,1)

    # ---- log-partition via forward algorithm ----
    trans_t = trans.T                               # trans_t[j, i] = trans[i, j]
    alpha0 = start + emit[0]                        # (B, L)

    def body(t, alpha):
        e_t = emit_ref[t]                           # dynamic first-axis load, (B, L)
        sc = alpha[:, None, :] + trans_t[None, :, :]                               # (B,L,L)
        m = jnp.max(sc, axis=-1, keepdims=True)
        lse = m[..., 0] + jnp.log(jnp.sum(jnp.exp(sc - m), axis=-1))               # (B,L)
        return lse + e_t

    alpha = lax.fori_loop(1, S, body, alpha0)
    fin = alpha + end                                                              # (B,L)
    m = jnp.max(fin, axis=-1, keepdims=True)
    logz = m + jnp.log(jnp.sum(jnp.exp(fin - m), axis=-1, keepdims=True))          # (B,1)

    out_ref[...] = gold - logz


def crf_log_likelihood(logits, labels_onehot_sbl, trans, start, end):
    B, S, L = logits.shape
    emit = jnp.transpose(logits, (1, 0, 2))         # time-major (S, B, L); tiny tensor
    return pl.pallas_call(
        _crf_kernel,
        out_shape=jax.ShapeDtypeStruct((B, 1), jnp.float32),
        in_specs=[_full((S, B, L)), _full((S, B, L)), _full((L, L)),
                  _full((1, L)), _full((1, L))],
        out_specs=_full((B, 1)),
    )(emit, labels_onehot_sbl, trans, start.reshape(1, L), end.reshape(1, L))


# ---------------------------------------------------------------------------
# BertLayer forward -> classifier logits (glue around the kernels above)
# ---------------------------------------------------------------------------
def bert_layer_logits(xf, mask_b1s, p, cls_w_p, cls_b_p, num_heads, B, S, H):
    Dh = H // num_heads
    # fused QKV projection: one (M,H)x(H,3H) matmul
    qkv = dense(xf, p["qkv_w"], p["qkv_b"])                            # (B*S, 3H) bf16
    # head-major layout so attention selects heads via leading-axis blocks (no lane slicing)
    qkv5 = qkv.reshape(B, S, 3, num_heads, Dh).transpose(2, 0, 3, 1, 4)  # (3,B,h,S,Dh)
    ctx = attention(qkv5, mask_b1s)                                    # (B, heads, S, Dh) bf16
    ctx = jnp.transpose(ctx, (0, 2, 1, 3)).reshape(B * S, H)
    # attention output dense + residual + LayerNorm fused
    h1 = dense_ln(ctx, p["ao_w"], p["ao_b"], xf, p["ln1_g"], p["ln1_b"])   # (B*S, H) bf16
    inter = dense(h1, p["ff1_w"], p["ff1_b"], act="gelu")              # (B*S, I) bf16
    # FF2 + residual + LayerNorm + classifier fully fused; BertLayer output never hits HBM
    # (dropout == identity in this deterministic forward)
    logits_p = dense_ln_cls(inter, p["ff2_w"], p["ff2_b"], h1,
                            p["ln2_g"], p["ln2_b"], cls_w_p, cls_b_p)  # (B*S, Lp) f32
    return logits_p


# ---------------------------------------------------------------------------
# GRoIE forward
# ---------------------------------------------------------------------------
def groie_forward(params, layers, attention_mask, labels, num_heads):
    count = len(params["bert"])
    B, S, H = layers[0].shape
    L = params["cls_w"].shape[1]
    Lp = ((L + 127) // 128) * 128                                    # lane-dense logits output

    mask_b1s = attention_mask.astype(jnp.float32).reshape(B, 1, S)   # 0/1 mask; additive in-kernel
    labels_oh = jnp.transpose(jax.nn.one_hot(labels, L, dtype=jnp.float32), (1, 0, 2))  # (S,B,L)

    cls_w_p = jnp.pad(params["cls_w"].astype(jnp.bfloat16), ((0, 0), (0, Lp - L)))
    cls_b_p = jnp.pad(params["cls_b"].astype(jnp.float32), (0, Lp - L)).reshape(1, Lp)

    losses, logitses = [], []
    for i in range(count):
        p = params["bert"][i]
        xf = layers[-i - 1].reshape(B * S, H).astype(jnp.bfloat16)
        logits_p = bert_layer_logits(xf, mask_b1s, p, cls_w_p, cls_b_p,
                                     num_heads, B, S, H)             # (B*S, Lp) f32
        logits = logits_p[:, :L].reshape(B, S, L)                    # drop lane padding
        c = params["crf"][i]
        ll = crf_log_likelihood(logits, labels_oh, c["trans"], c["start"], c["end"])  # (B,1)
        losses.append(jnp.sum(ll))      # pytorch-crf style 'sum' reduction over batch
        logitses.append(logits)

    total_loss = jnp.sum(jnp.stack(losses), axis=0)
    avg_logits = jnp.sum(jnp.stack(logitses), axis=0) / count
    return -total_loss, avg_logits


# ---------------------------------------------------------------------------
# deterministic parameter init (weights stored bf16 for MXU; norms/biases/CRF f32)
# ---------------------------------------------------------------------------
def init_params(key, count, H, I, L):
    kit = iter(jax.random.split(key, count * 16 + 4))

    def nrm(shape, std=0.02, dtype=jnp.bfloat16):
        return (std * jax.random.normal(next(kit), shape, dtype=jnp.float32)).astype(dtype)

    bert, crf = [], []
    for _ in range(count):
        qkv_w = jnp.concatenate([nrm((H, H)), nrm((H, H)), nrm((H, H))], axis=1)   # (H, 3H)
        bert.append(dict(
            qkv_w=qkv_w, qkv_b=jnp.zeros((3 * H,), jnp.float32),
            ao_w=nrm((H, H)), ao_b=jnp.zeros((H,), jnp.float32),
            ln1_g=jnp.ones((H,), jnp.float32), ln1_b=jnp.zeros((H,), jnp.float32),
            ff1_w=nrm((H, I)), ff1_b=jnp.zeros((I,), jnp.float32),
            ff2_w=nrm((I, H)), ff2_b=jnp.zeros((H,), jnp.float32),
            ln2_g=jnp.ones((H,), jnp.float32), ln2_b=jnp.zeros((H,), jnp.float32),
        ))
        crf.append(dict(trans=nrm((L, L), 0.1, jnp.float32),
                        start=nrm((L,), 0.1, jnp.float32),
                        end=nrm((L,), 0.1, jnp.float32)))
    return dict(bert=bert, crf=crf,
                cls_w=nrm((H, L)), cls_b=jnp.zeros((L,), jnp.float32))


if __name__ == "__main__":
    B, S, H, HEADS, I, L, COUNT = 2, 8, 32, 4, 64, 4, 2

    key = jax.random.PRNGKey(0)
    k_layers, k_labels, k_params = jax.random.split(key, 3)

    layers = [0.1 * jax.random.normal(jax.random.fold_in(k_layers, i), (B, S, H), dtype=jnp.float32)
              for i in range(COUNT)]
    attention_mask = jnp.ones((B, S), dtype=jnp.float32)
    labels = jax.random.randint(k_labels, (B, S), 0, L)
    params = init_params(k_params, COUNT, H, I, L)

    fwd = jax.jit(functools.partial(groie_forward, num_heads=HEADS))
    neg_total_loss, avg_logits = fwd(params, layers, attention_mask, labels)
    jax.block_until_ready((neg_total_loss, avg_logits))
    assert avg_logits.shape == (B, S, L)
    print("KERNEL_OK")
</pallas_src>

<mosaic_0001>
module attributes {stable_mosaic.version = 11 : i64} {
  func.func @_dense_kernel(%arg0: i32, %arg1: i32, %arg2: i32, %arg3: memref<16x32xbf16, #tpu.memory_space<vmem>>, %arg4: memref<32x96xbf16, #tpu.memory_space<vmem>>, %arg5: memref<1x96xf32, #tpu.memory_space<vmem>>, %arg6: memref<16x96xbf16, #tpu.memory_space<vmem>>, %arg7: memref<16x96xf32, #tpu.memory_space<vmem>>) attributes {dimension_semantics = [#tpu.dimension_semantics<parallel>, #tpu.dimension_semantics<parallel>, #tpu.dimension_semantics<arbitrary>], iteration_bounds = array<i64: 1, 1, 1>, scalar_prefetch = 0 : i64, scratch_operands = 1 : i64, tpu.core_type = #tpu.core_type<tc>, window_params = [{transform_indices = @transform_0, window_bounds = array<i64: 16, 32>}, {transform_indices = @transform_1, window_bounds = array<i64: 32, 96>}, {transform_indices = @transform_2, window_bounds = array<i64: 1, 96>}, {transform_indices = @transform_3, window_bounds = array<i64: 16, 96>}]} {
    %c0_i32 = arith.constant 0 : i32
    %0 = arith.cmpi eq, %arg2, %c0_i32 : i32
    %1 = arith.extui %0 : i1 to i32
    %c0_i32_0 = arith.constant 0 : i32
    %2 = arith.cmpi ne, %1, %c0_i32_0 : i32
    scf.if %2 {
      %cst_10 = arith.constant 0.000000e+00 : f32
      %12 = vector.broadcast %cst_10 : f32 to vector<16x96xf32>
      %c0_11 = arith.constant 0 : index
      %c0_12 = arith.constant 0 : index
      %13 = vector.load %arg7[%c0_11, %c0_12] : memref<16x96xf32, #tpu.memory_space<vmem>>, vector<16x96xf32>
      tpu.vector_store %arg7[%c0_11, %c0_12], %12 {strides = array<i32>} : memref<16x96xf32, #tpu.memory_space<vmem>>, vector<16x96xf32>,
    } else {
    }
    %c0 = arith.constant 0 : index
    %c0_1 = arith.constant 0 : index
    %3 = vector.load %arg7[%c0, %c0_1] : memref<16x96xf32, #tpu.memory_space<vmem>>, vector<16x96xf32>
    %c0_2 = arith.constant 0 : index
    %c0_3 = arith.constant 0 : index
    %4 = vector.load %arg3[%c0_2, %c0_3] : memref<16x32xbf16, #tpu.memory_space<vmem>>, vector<16x32xbf16>
    %c0_4 = arith.constant 0 : index
    %c0_5 = arith.constant 0 : index
    %5 = vector.load %arg4[%c0_4, %c0_5] : memref<32x96xbf16, #tpu.memory_space<vmem>>, vector<32x96xbf16>
    %cst = arith.constant dense<0.000000e+00> : vector<16x96xf32>
    %6 = tpu.matmul %4, %5, %cst {dimension_numbers = #tpu.dot_dimension_numbers<[1], [0], [0], [1], [0, 0, 1, 1], [], []>} : vector<16x32xbf16>, vector<32x96xbf16>, vector<16x96xf32> -> vector<16x96xf32>
    %7 = arith.addf %3, %6 : vector<16x96xf32>
    %c0_6 = arith.constant 0 : index
    %c0_7 = arith.constant 0 : index
    %8 = vector.load %arg7[%c0_6, %c0_7] : memref<16x96xf32, #tpu.memory_space<vmem>>, vector<16x96xf32>
    tpu.vector_store %arg7[%c0_6, %c0_7], %7 {strides = array<i32>} : memref<16x96xf32, #tpu.memory_space<vmem>>, vector<16x96xf32>,
    %c0_i32_8 = arith.constant 0 : i32
    %9 = arith.cmpi eq, %arg2, %c0_i32_8 : i32
    %10 = arith.extui %9 : i1 to i32
    %c0_i32_9 = arith.constant 0 : i32
    %11 = arith.cmpi ne, %10, %c0_i32_9 : i32
    scf.if %11 {
      %c0_10 = arith.constant 0 : index
      %c0_11 = arith.constant 0 : index
      %12 = vector.load %arg7[%c0_10, %c0_11] : memref<16x96xf32, #tpu.memory_space<vmem>>, vector<16x96xf32>
      %c0_12 = arith.constant 0 : index
      %c0_13 = arith.constant 0 : index
      %13 = vector.load %arg5[%c0_12, %c0_13] : memref<1x96xf32, #tpu.memory_space<vmem>>, vector<1x96xf32>
      %14 = vector.broadcast %13 : vector<1x96xf32> to vector<16x96xf32>
      %15 = arith.addf %12, %14 : vector<16x96xf32>
      %16 = arith.truncf %15 : vector<16x96xf32> to vector<16x96xbf16>
      %c0_14 = arith.constant 0 : index
      %c0_15 = arith.constant 0 : index
      %17 = vector.load %arg6[%c0_14, %c0_15] : memref<16x96xbf16, #tpu.memory_space<vmem>>, vector<16x96xbf16>
      tpu.vector_store %arg6[%c0_14, %c0_15], %16 {strides = array<i32>} : memref<16x96xbf16, #tpu.memory_space<vmem>>, vector<16x96xbf16>,
    } else {
    }
    return
  }
  func.func @transform_0(%arg0: i32, %arg1: i32, %arg2: i32) -> (i32, i32) {
    %c0_i32 = arith.constant 0 : i32
    return %arg0, %arg2 : i32, i32
  }
  func.func @transform_1(%arg0: i32, %arg1: i32, %arg2: i32) -> (i32, i32) {
    %c0_i32 = arith.constant 0 : i32
    return %arg2, %arg1 : i32, i32
  }
  func.func @transform_2(%arg0: i32, %arg1: i32, %arg2: i32) -> (i32, i32) {
    %c0_i32 = arith.constant 0 : i32
    %c0_i32_0 = arith.constant 0 : i32
    return %c0_i32, %arg1 : i32, i32
  }
  func.func @transform_3(%arg0: i32, %arg1: i32, %arg2: i32) -> (i32, i32) {
    %c0_i32 = arith.constant 0 : i32
    return %arg0, %arg1 : i32, i32
  }
}

module attributes {stable_mosaic.version = 11 : i64} {
  func.func @_attn_head_kernel(%arg0: i32, %arg1: i32, %arg2: memref<1x1x1x8x8xbf16, #tpu.memory_space<vmem>>, %arg3: memref<1x1x1x8x8xbf16, #tpu.memory_space<vmem>>, %arg4: memref<1x1x1x8x8xbf16, #tpu.memory_space<vmem>>, %arg5: memref<1x1x8xf32, #tpu.memory_space<vmem>>, %arg6: memref<1x1x8x8xbf16, #tpu.memory_space<vmem>>) attributes {dimension_semantics = [#tpu.dimension_semantics<parallel>, #tpu.dimension_semantics<parallel>], iteration_bounds = array<i64: 2, 4>, scalar_prefetch = 0 : i64, scratch_operands = 0 : i64, tpu.core_type = #tpu.core_type<tc>, window_params = [{transform_indices = @transform_0, window_bounds = array<i64: 1, 1, 1, 8, 8>}, {transform_indices = @transform_1, window_bounds = array<i64: 1, 1, 1, 8, 8>}, {transform_indices = @transform_2, window_bounds = array<i64: 1, 1, 1, 8, 8>}, {transform_indices = @transform_3, window_bounds = array<i64: 1, 1, 8>}, {transform_indices = @transform_4, window_bounds = array<i64: 1, 1, 8, 8>}]} {
    %c0 = arith.constant 0 : index
    %c0_0 = arith.constant 0 : index
    %c0_1 = arith.constant 0 : index
    %c0_2 = arith.constant 0 : index
    %c0_3 = arith.constant 0 : index
    %0 = vector.load %arg2[%c0, %c0_0, %c0_1, %c0_2, %c0_3] : memref<1x1x1x8x8xbf16, #tpu.memory_space<vmem>>, vector<1x1x1x8x8xbf16>
    %1 = vector.shape_cast %0 : vector<1x1x1x8x8xbf16> to vector<8x8xbf16>
    %c0_4 = arith.constant 0 : index
    %c0_5 = arith.constant 0 : index
    %c0_6 = arith.constant 0 : index
    %c0_7 = arith.constant 0 : index
    %c0_8 = arith.constant 0 : index
    %2 = vector.load %arg3[%c0_4, %c0_5, %c0_6, %c0_7, %c0_8] : memref<1x1x1x8x8xbf16, #tpu.memory_space<vmem>>, vector<1x1x1x8x8xbf16>
    %3 = vector.shape_cast %2 : vector<1x1x1x8x8xbf16> to vector<8x8xbf16>
    %c0_9 = arith.constant 0 : index
    %c0_10 = arith.constant 0 : index
    %c0_11 = arith.constant 0 : index
    %c0_12 = arith.constant 0 : index
    %c0_13 = arith.constant 0 : index
    %4 = vector.load %arg4[%c0_9, %c0_10, %c0_11, %c0_12, %c0_13] : memref<1x1x1x8x8xbf16, #tpu.memory_space<vmem>>, vector<1x1x1x8x8xbf16>
    %5 = vector.shape_cast %4 : vector<1x1x1x8x8xbf16> to vector<8x8xbf16>
    %c0_14 = arith.constant 0 : index
    %c0_15 = arith.constant 0 : index
    %c0_16 = arith.constant 0 : index
    %6 = vector.load %arg5[%c0_14, %c0_15, %c0_16] : memref<1x1x8xf32, #tpu.memory_space<vmem>>, vector<1x1x8xf32>
    %7 = vector.shape_cast %6 : vector<1x1x8xf32> to vector<1x8xf32>
    %cst = arith.constant 1.000000e+00 : f32
    %8 = vector.broadcast %cst : f32 to vector<1x8xf32>
    %9 = arith.subf %8, %7 : vector<1x8xf32>
    %cst_17 = arith.constant -1.000000e+04 : f32
    %10 = vector.broadcast %cst_17 : f32 to vector<1x8xf32>
    %11 = arith.mulf %9, %10 : vector<1x8xf32>
    %cst_18 = arith.constant dense<0.000000e+00> : vector<8x8xf32>
    %12 = tpu.matmul %1, %3, %cst_18 {dimension_numbers = #tpu.dot_dimension_numbers<[1], [1], [0], [0], [0, 0, 1, 0], [], []>} : vector<8x8xbf16>, vector<8x8xbf16>, vector<8x8xf32> -> vector<8x8xf32>
    %cst_19 = arith.constant 0.353553385 : f32
    %13 = vector.broadcast %cst_19 : f32 to vector<8x8xf32>
    %14 = arith.mulf %12, %13 : vector<8x8xf32>
    %15 = vector.broadcast %11 : vector<1x8xf32> to vector<8x8xf32>
    %16 = arith.addf %14, %15 : vector<8x8xf32>
    %cst_20 = arith.constant dense<0xFF800000> : vector<8xf32>
    %17 = vector.multi_reduction <maximumf>, %16, %cst_20 [1] : vector<8x8xf32> to vector<8xf32>
    %18 = vector.shape_cast %17 : vector<8xf32> to vector<8x1xf32>
    %19 = vector.broadcast %18 : vector<8x1xf32> to vector<8x8xf32>
    %20 = arith.subf %16, %19 : vector<8x8xf32>
    %21 = math.exp %20 : vector<8x8xf32>
    %cst_21 = arith.constant dense<0.000000e+00> : vector<8xf32>
    %22 = vector.multi_reduction <add>, %21, %cst_21 [1] : vector<8x8xf32> to vector<8xf32>
    %23 = vector.shape_cast %22 : vector<8xf32> to vector<8x1xf32>
    %24 = tpu.reciprocal %23 {approx = true} : vector<8x1xf32> -> vector<8x1xf32>
    %25 = vector.broadcast %24 : vector<8x1xf32> to vector<8x8xf32>
    %26 = arith.mulf %21, %25 : vector<8x8xf32>
    %27 = arith.truncf %26 : vector<8x8xf32> to vector<8x8xbf16>
    %cst_22 = arith.constant dense<0.000000e+00> : vector<8x8xf32>
    %28 = tpu.matmul %27, %5, %cst_22 {dimension_numbers = #tpu.dot_dimension_numbers<[1], [0], [0], [1], [0, 0, 1, 1], [], []>} : vector<8x8xbf16>, vector<8x8xbf16>, vector<8x8xf32> -> vector<8x8xf32>
    %29 = arith.truncf %28 : vector<8x8xf32> to vector<8x8xbf16>
    %c0_23 = arith.constant 0 : index
    %c0_24 = arith.constant 0 : index
    %c0_25 = arith.constant 0 : index
    %c0_26 = arith.constant 0 : index
    %30 = vector.load %arg6[%c0_23, %c0_24, %c0_25, %c0_26] : memref<1x1x8x8xbf16, #tpu.memory_space<vmem>>, vector<1x1x8x8xbf16>
    %31 = vector.shape_cast %30 : vector<1x1x8x8xbf16> to vector<8x8xbf16>
    %32 = vector.shape_cast %29 : vector<8x8xbf16> to vector<1x1x8x8xbf16>
    tpu.vector_store %arg6[%c0_23, %c0_24, %c0_25, %c0_26], %32 {strides = array<i32>} : memref<1x1x8x8xbf16, #tpu.memory_space<vmem>>, vector<1x1x8x8xbf16>,
    return
  }
  func.func @transform_0(%arg0: i32, %arg1: i32) -> (i32, i32, i32, i32, i32) {
    %c0_i32 = arith.constant 0 : i32
    %c0_i32_0 = arith.constant 0 : i32
    %c0_i32_1 = arith.constant 0 : i32
    %c0_i32_2 = arith.constant 0 : i32
    return %c0_i32, %arg0, %arg1, %c0_i32_0, %c0_i32_1 : i32, i32, i32, i32, i32
  }
  func.func @transform_1(%arg0: i32, %arg1: i32) -> (i32, i32, i32, i32, i32) {
    %c1_i32 = arith.constant 1 : i32
    %c0_i32 = arith.constant 0 : i32
    %c0_i32_0 = arith.constant 0 : i32
    %c0_i32_1 = arith.constant 0 : i32
    return %c1_i32, %arg0, %arg1, %c0_i32, %c0_i32_0 : i32, i32, i32, i32, i32
  }
  func.func @transform_2(%arg0: i32, %arg1: i32) -> (i32, i32, i32, i32, i32) {
    %c2_i32 = arith.constant 2 : i32
    %c0_i32 = arith.constant 0 : i32
    %c0_i32_0 = arith.constant 0 : i32
    %c0_i32_1 = arith.constant 0 : i32
    return %c2_i32, %arg0, %arg1, %c0_i32, %c0_i32_0 : i32, i32, i32, i32, i32
  }
  func.func @transform_3(%arg0: i32, %arg1: i32) -> (i32, i32, i32) {
    %c0_i32 = arith.constant 0 : i32
    %c0_i32_0 = arith.constant 0 : i32
    %c0_i32_1 = arith.constant 0 : i32
    return %arg0, %c0_i32, %c0_i32_0 : i32, i32, i32
  }
  func.func @transform_4(%arg0: i32, %arg1: i32) -> (i32, i32, i32, i32) {
    %c0_i32 = arith.constant 0 : i32
    %c0_i32_0 = arith.constant 0 : i32
    %c0_i32_1 = arith.constant 0 : i32
    return %arg0, %arg1, %c0_i32, %c0_i32_0 : i32, i32, i32, i32
  }
}

module attributes {stable_mosaic.version = 11 : i64} {
  func.func @_dense_ln_kernel(%arg0: i32, %arg1: i32, %arg2: i32, %arg3: memref<16x32xbf16, #tpu.memory_space<vmem>>, %arg4: memref<32x32xbf16, #tpu.memory_space<vmem>>, %arg5: memref<1x32xf32, #tpu.memory_space<vmem>>, %arg6: memref<16x32xbf16, #tpu.memory_space<vmem>>, %arg7: memref<1x32xf32, #tpu.memory_space<vmem>>, %arg8: memref<1x32xf32, #tpu.memory_space<vmem>>, %arg9: memref<16x32xbf16, #tpu.memory_space<vmem>>, %arg10: memref<16x32xf32, #tpu.memory_space<vmem>>) attributes {dimension_semantics = [#tpu.dimension_semantics<parallel>, #tpu.dimension_semantics<parallel>, #tpu.dimension_semantics<arbitrary>], iteration_bounds = array<i64: 1, 1, 1>, scalar_prefetch = 0 : i64, scratch_operands = 1 : i64, tpu.core_type = #tpu.core_type<tc>, window_params = [{transform_indices = @transform_0, window_bounds = array<i64: 16, 32>}, {transform_indices = @transform_1, window_bounds = array<i64: 32, 32>}, {transform_indices = @transform_2, window_bounds = array<i64: 1, 32>}, {transform_indices = @transform_3, window_bounds = array<i64: 16, 32>}, {transform_indices = @transform_4, window_bounds = array<i64: 1, 32>}, {transform_indices = @transform_5, window_bounds = array<i64: 1, 32>}, {transform_indices = @transform_6, window_bounds = array<i64: 16, 32>}]} {
    %c0_i32 = arith.constant 0 : i32
    %0 = arith.cmpi eq, %arg2, %c0_i32 : i32
    %1 = arith.extui %0 : i1 to i32
    %c0_i32_0 = arith.constant 0 : i32
    %2 = arith.cmpi ne, %1, %c0_i32_0 : i32
    scf.if %2 {
      %cst_10 = arith.constant 0.000000e+00 : f32
      %12 = vector.broadcast %cst_10 : f32 to vector<16x32xf32>
      %c0_11 = arith.constant 0 : index
      %c0_12 = arith.constant 0 : index
      %13 = vector.load %arg10[%c0_11, %c0_12] : memref<16x32xf32, #tpu.memory_space<vmem>>, vector<16x32xf32>
      tpu.vector_store %arg10[%c0_11, %c0_12], %12 {strides = array<i32>} : memref<16x32xf32, #tpu.memory_space<vmem>>, vector<16x32xf32>,
    } else {
    }
    %c0 = arith.constant 0 : index
    %c0_1 = arith.constant 0 : index
    %3 = vector.load %arg10[%c0, %c0_1] : memref<16x32xf32, #tpu.memory_space<vmem>>, vector<16x32xf32>
    %c0_2 = arith.constant 0 : index
    %c0_3 = arith.constant 0 : index
    %4 = vector.load %arg3[%c0_2, %c0_3] : memref<16x32xbf16, #tpu.memory_space<vmem>>, vector<16x32xbf16>
    %c0_4 = arith.constant 0 : index
    %c0_5 = arith.constant 0 : index
    %5 = vector.load %arg4[%c0_4, %c0_5] : memref<32x32xbf16, #tpu.memory_space<vmem>>, vector<32x32xbf16>
    %cst = arith.constant dense<0.000000e+00> : vector<16x32xf32>
    %6 = tpu.matmul %4, %5, %cst {dimension_numbers = #tpu.dot_dimension_numbers<[1], [0], [0], [1], [0, 0, 1, 1], [], []>} : vector<16x32xbf16>, vector<32x32xbf16>, vector<16x32xf32> -> vector<16x32xf32>
    %7 = arith.addf %3, %6 : vector<16x32xf32>
    %c0_6 = arith.constant 0 : index
    %c0_7 = arith.constant 0 : index
    %8 = vector.load %arg10[%c0_6, %c0_7] : memref<16x32xf32, #tpu.memory_space<vmem>>, vector<16x32xf32>
    tpu.vector_store %arg10[%c0_6, %c0_7], %7 {strides = array<i32>} : memref<16x32xf32, #tpu.memory_space<vmem>>, vector<16x32xf32>,
    %c0_i32_8 = arith.constant 0 : i32
    %9 = arith.cmpi eq, %arg2, %c0_i32_8 : i32
    %10 = arith.extui %9 : i1 to i32
    %c0_i32_9 = arith.constant 0 : i32
    %11 = arith.cmpi ne, %10, %c0_i32_9 : i32
    scf.if %11 {
      %c0_10 = arith.constant 0 : index
      %c0_11 = arith.constant 0 : index
      %12 = vector.load %arg10[%c0_10, %c0_11] : memref<16x32xf32, #tpu.memory_space<vmem>>, vector<16x32xf32>
      %c0_12 = arith.constant 0 : index
      %c0_13 = arith.constant 0 : index
      %13 = vector.load %arg5[%c0_12, %c0_13] : memref<1x32xf32, #tpu.memory_space<vmem>>, vector<1x32xf32>
      %14 = vector.broadcast %13 : vector<1x32xf32> to vector<16x32xf32>
      %15 = arith.addf %12, %14 : vector<16x32xf32>
      %c0_14 = arith.constant 0 : index
      %c0_15 = arith.constant 0 : index
      %16 = vector.load %arg6[%c0_14, %c0_15] : memref<16x32xbf16, #tpu.memory_space<vmem>>, vector<16x32xbf16>
      %17 = arith.extf %16 : vector<16x32xbf16> to vector<16x32xf32>
      %18 = arith.addf %15, %17 : vector<16x32xf32>
      %c0_16 = arith.constant 0 : index
      %c0_17 = arith.constant 0 : index
      %19 = vector.load %arg7[%c0_16, %c0_17] : memref<1x32xf32, #tpu.memory_space<vmem>>, vector<1x32xf32>
      %c0_18 = arith.constant 0 : index
      %c0_19 = arith.constant 0 : index
      %20 = vector.load %arg8[%c0_18, %c0_19] : memref<1x32xf32, #tpu.memory_space<vmem>>, vector<1x32xf32>
      %cst_20 = arith.constant dense<0.000000e+00> : vector<16xf32>
      %21 = vector.multi_reduction <add>, %18, %cst_20 [1] : vector<16x32xf32> to vector<16xf32>
      %22 = vector.shape_cast %21 : vector<16xf32> to vector<16x1xf32>
      %cst_21 = arith.constant 3.200000e+01 : f32
      %23 = vector.broadcast %cst_21 : f32 to vector<16x1xf32>
      %24 = arith.divf %22, %23 : vector<16x1xf32>
      %25 = vector.broadcast %24 : vector<16x1xf32> to vector<16x32xf32>
      %26 = arith.subf %18, %25 : vector<16x32xf32>
      %27 = arith.mulf %26, %26 : vector<16x32xf32>
      %cst_22 = arith.constant dense<0.000000e+00> : vector<16xf32>
      %28 = vector.multi_reduction <add>, %27, %cst_22 [1] : vector<16x32xf32> to vector<16xf32>
      %29 = vector.shape_cast %28 : vector<16xf32> to vector<16x1xf32>
      %cst_23 = arith.constant 3.200000e+01 : f32
      %30 = vector.broadcast %cst_23 : f32 to vector<16x1xf32>
      %31 = arith.divf %29, %30 : vector<16x1xf32>
      %32 = vector.broadcast %24 : vector<16x1xf32> to vector<16x32xf32>
      %33 = arith.subf %18, %32 : vector<16x32xf32>
      %cst_24 = arith.constant 9.99999996E-13 : f32
      %34 = vector.broadcast %cst_24 : f32 to vector<16x1xf32>
      %35 = arith.addf %31, %34 : vector<16x1xf32>
      %36 = math.rsqrt %35 : vector<16x1xf32>
      %37 = vector.broadcast %36 : vector<16x1xf32> to vector<16x32xf32>
      %38 = arith.mulf %33, %37 : vector<16x32xf32>
      %39 = vector.broadcast %19 : vector<1x32xf32> to vector<16x32xf32>
      %40 = arith.mulf %38, %39 : vector<16x32xf32>
      %41 = vector.broadcast %20 : vector<1x32xf32> to vector<16x32xf32>
      %42 = arith.addf %40, %41 : vector<16x32xf32>
      %43 = arith.truncf %42 : vector<16x32xf32> to vector<16x32xbf16>
      %c0_25 = arith.constant 0 : index
      %c0_26 = arith.constant 0 : index
      %44 = vector.load %arg9[%c0_25, %c0_26] : memref<16x32xbf16, #tpu.memory_space<vmem>>, vector<16x32xbf16>
      tpu.vector_store %arg9[%c0_25, %c0_26], %43 {strides = array<i32>} : memref<16x32xbf16, #tpu.memory_space<vmem>>, vector<16x32xbf16>,
    } else {
    }
    return
  }
  func.func @transform_0(%arg0: i32, %arg1: i32, %arg2: i32) -> (i32, i32) {
    %c0_i32 = arith.constant 0 : i32
    return %arg0, %arg2 : i32, i32
  }
  func.func @transform_1(%arg0: i32, %arg1: i32, %arg2: i32) -> (i32, i32) {
    %c0_i32 = arith.constant 0 : i32
    return %arg2, %arg1 : i32, i32
  }
  func.func @transform_2(%arg0: i32, %arg1: i32, %arg2: i32) -> (i32, i32) {
    %c0_i32 = arith.constant 0 : i32
    %c0_i32_0 = arith.constant 0 : i32
    return %c0_i32, %arg1 : i32, i32
  }
  func.func @transform_3(%arg0: i32, %arg1: i32, %arg2: i32) -> (i32, i32) {
    %c0_i32 = arith.constant 0 : i32
    return %arg0, %arg1 : i32, i32
  }
  func.func @transform_4(%arg0: i32, %arg1: i32, %arg2: i32) -> (i32, i32) {
    %c0_i32 = arith.constant 0 : i32
    %c0_i32_0 = arith.constant 0 : i32
    return %c0_i32, %arg1 : i32, i32
  }
  func.func @transform_5(%arg0: i32, %arg1: i32, %arg2: i32) -> (i32, i32) {
    %c0_i32 = arith.constant 0 : i32
    %c0_i32_0 = arith.constant 0 : i32
    return %c0_i32, %arg1 : i32, i32
  }
  func.func @transform_6(%arg0: i32, %arg1: i32, %arg2: i32) -> (i32, i32) {
    %c0_i32 = arith.constant 0 : i32
    return %arg0, %arg1 : i32, i32
  }
}

module attributes {stable_mosaic.version = 11 : i64} {
  func.func @_dense_kernel(%arg0: i32, %arg1: i32, %arg2: i32, %arg3: memref<16x32xbf16, #tpu.memory_space<vmem>>, %arg4: memref<32x64xbf16, #tpu.memory_space<vmem>>, %arg5: memref<1x64xf32, #tpu.memory_space<vmem>>, %arg6: memref<16x64xbf16, #tpu.memory_space<vmem>>, %arg7: memref<16x64xf32, #tpu.memory_space<vmem>>) attributes {dimension_semantics = [#tpu.dimension_semantics<parallel>, #tpu.dimension_semantics<parallel>, #tpu.dimension_semantics<arbitrary>], iteration_bounds = array<i64: 1, 1, 1>, scalar_prefetch = 0 : i64, scratch_operands = 1 : i64, tpu.core_type = #tpu.core_type<tc>, window_params = [{transform_indices = @transform_0, window_bounds = array<i64: 16, 32>}, {transform_indices = @transform_1, window_bounds = array<i64: 32, 64>}, {transform_indices = @transform_2, window_bounds = array<i64: 1, 64>}, {transform_indices = @transform_3, window_bounds = array<i64: 16, 64>}]} {
    %c0_i32 = arith.constant 0 : i32
    %0 = arith.cmpi eq, %arg2, %c0_i32 : i32
    %1 = arith.extui %0 : i1 to i32
    %c0_i32_0 = arith.constant 0 : i32
    %2 = arith.cmpi ne, %1, %c0_i32_0 : i32
    scf.if %2 {
      %cst_10 = arith.constant 0.000000e+00 : f32
      %12 = vector.broadcast %cst_10 : f32 to vector<16x64xf32>
      %c0_11 = arith.constant 0 : index
      %c0_12 = arith.constant 0 : index
      %13 = vector.load %arg7[%c0_11, %c0_12] : memref<16x64xf32, #tpu.memory_space<vmem>>, vector<16x64xf32>
      tpu.vector_store %arg7[%c0_11, %c0_12], %12 {strides = array<i32>} : memref<16x64xf32, #tpu.memory_space<vmem>>, vector<16x64xf32>,
    } else {
    }
    %c0 = arith.constant 0 : index
    %c0_1 = arith.constant 0 : index
    %3 = vector.load %arg7[%c0, %c0_1] : memref<16x64xf32, #tpu.memory_space<vmem>>, vector<16x64xf32>
    %c0_2 = arith.constant 0 : index
    %c0_3 = arith.constant 0 : index
    %4 = vector.load %arg3[%c0_2, %c0_3] : memref<16x32xbf16, #tpu.memory_space<vmem>>, vector<16x32xbf16>
    %c0_4 = arith.constant 0 : index
    %c0_5 = arith.constant 0 : index
    %5 = vector.load %arg4[%c0_4, %c0_5] : memref<32x64xbf16, #tpu.memory_space<vmem>>, vector<32x64xbf16>
    %cst = arith.constant dense<0.000000e+00> : vector<16x64xf32>
    %6 = tpu.matmul %4, %5, %cst {dimension_numbers = #tpu.dot_dimension_numbers<[1], [0], [0], [1], [0, 0, 1, 1], [], []>} : vector<16x32xbf16>, vector<32x64xbf16>, vector<16x64xf32> -> vector<16x64xf32>
    %7 = arith.addf %3, %6 : vector<16x64xf32>
    %c0_6 = arith.constant 0 : index
    %c0_7 = arith.constant 0 : index
    %8 = vector.load %arg7[%c0_6, %c0_7] : memref<16x64xf32, #tpu.memory_space<vmem>>, vector<16x64xf32>
    tpu.vector_store %arg7[%c0_6, %c0_7], %7 {strides = array<i32>} : memref<16x64xf32, #tpu.memory_space<vmem>>, vector<16x64xf32>,
    %c0_i32_8 = arith.constant 0 : i32
    %9 = arith.cmpi eq, %arg2, %c0_i32_8 : i32
    %10 = arith.extui %9 : i1 to i32
    %c0_i32_9 = arith.constant 0 : i32
    %11 = arith.cmpi ne, %10, %c0_i32_9 : i32
    scf.if %11 {
      %c0_10 = arith.constant 0 : index
      %c0_11 = arith.constant 0 : index
      %12 = vector.load %arg7[%c0_10, %c0_11] : memref<16x64xf32, #tpu.memory_space<vmem>>, vector<16x64xf32>
      %c0_12 = arith.constant 0 : index
      %c0_13 = arith.constant 0 : index
      %13 = vector.load %arg5[%c0_12, %c0_13] : memref<1x64xf32, #tpu.memory_space<vmem>>, vector<1x64xf32>
      %14 = vector.broadcast %13 : vector<1x64xf32> to vector<16x64xf32>
      %15 = arith.addf %12, %14 : vector<16x64xf32>
      %cst_14 = arith.constant 5.000000e-01 : f32
      %16 = vector.broadcast %cst_14 : f32 to vector<16x64xf32>
      %17 = arith.mulf %16, %15 : vector<16x64xf32>
      %cst_15 = arith.constant 4.471500e-02 : f32
      %18 = vector.broadcast %cst_15 : f32 to vector<16x64xf32>
      %19 = arith.mulf %18, %15 : vector<16x64xf32>
      %20 = arith.mulf %19, %15 : vector<16x64xf32>
      %21 = arith.mulf %20, %15 : vector<16x64xf32>
      %22 = arith.addf %15, %21 : vector<16x64xf32>
      %cst_16 = arith.constant 0.797884583 : f32
      %23 = vector.broadcast %cst_16 : f32 to vector<16x64xf32>
      %24 = arith.mulf %23, %22 : vector<16x64xf32>
      %25 = math.tanh %24 : vector<16x64xf32>
      %cst_17 = arith.constant 1.000000e+00 : f32
      %26 = vector.broadcast %cst_17 : f32 to vector<16x64xf32>
      %27 = arith.addf %26, %25 : vector<16x64xf32>
      %28 = arith.mulf %17, %27 : vector<16x64xf32>
      %29 = arith.truncf %28 : vector<16x64xf32> to vector<16x64xbf16>
      %c0_18 = arith.constant 0 : index
      %c0_19 = arith.constant 0 : index
      %30 = vector.load %arg6[%c0_18, %c0_19] : memref<16x64xbf16, #tpu.memory_space<vmem>>, vector<16x64xbf16>
      tpu.vector_store %arg6[%c0_18, %c0_19], %29 {strides = array<i32>} : memref<16x64xbf16, #tpu.memory_space<vmem>>, vector<16x64xbf16>,
    } else {
    }
    return
  }
  func.func @transform_0(%arg0: i32, %arg1: i32, %arg2: i32) -> (i32, i32) {
    %c0_i32 = arith.constant 0 : i32
    return %arg0, %arg2 : i32, i32
  }
  func.func @transform_1(%arg0: i32, %arg1: i32, %arg2: i32) -> (i32, i32) {
    %c0_i32 = arith.constant 0 : i32
    return %arg2, %arg1 : i32, i32
  }
  func.func @transform_2(%arg0: i32, %arg1: i32, %arg2: i32) -> (i32, i32) {
    %c0_i32 = arith.constant 0 : i32
    %c0_i32_0 = arith.constant 0 : i32
    return %c0_i32, %arg1 : i32, i32
  }
  func.func @transform_3(%arg0: i32, %arg1: i32, %arg2: i32) -> (i32, i32) {
    %c0_i32 = arith.constant 0 : i32
    return %arg0, %arg1 : i32, i32
  }
}

module attributes {stable_mosaic.version = 11 : i64} {
  func.func @_dense_ln_cls_kernel(%arg0: i32, %arg1: i32, %arg2: i32, %arg3: memref<16x64xbf16, #tpu.memory_space<vmem>>, %arg4: memref<64x32xbf16, #tpu.memory_space<vmem>>, %arg5: memref<1x32xf32, #tpu.memory_space<vmem>>, %arg6: memref<16x32xbf16, #tpu.memory_space<vmem>>, %arg7: memref<1x32xf32, #tpu.memory_space<vmem>>, %arg8: memref<1x32xf32, #tpu.memory_space<vmem>>, %arg9: memref<32x128xbf16, #tpu.memory_space<vmem>>, %arg10: memref<1x128xf32, #tpu.memory_space<vmem>>, %arg11: memref<16x128xf32, #tpu.memory_space<vmem>>, %arg12: memref<16x32xf32, #tpu.memory_space<vmem>>) attributes {dimension_semantics = [#tpu.dimension_semantics<parallel>, #tpu.dimension_semantics<parallel>, #tpu.dimension_semantics<arbitrary>], iteration_bounds = array<i64: 1, 1, 1>, scalar_prefetch = 0 : i64, scratch_operands = 1 : i64, tpu.core_type = #tpu.core_type<tc>, window_params = [{transform_indices = @transform_0, window_bounds = array<i64: 16, 64>}, {transform_indices = @transform_1, window_bounds = array<i64: 64, 32>}, {transform_indices = @transform_2, window_bounds = array<i64: 1, 32>}, {transform_indices = @transform_3, window_bounds = array<i64: 16, 32>}, {transform_indices = @transform_4, window_bounds = array<i64: 1, 32>}, {transform_indices = @transform_5, window_bounds = array<i64: 1, 32>}, {transform_indices = @transform_6, window_bounds = array<i64: 32, 128>}, {pipeline_mode = #tpu.pipeline_mode<synchronous>, transform_indices = @transform_7, window_bounds = array<i64: 1, 128>}, {transform_indices = @transform_8, window_bounds = array<i64: 16, 128>}]} {
    %c0_i32 = arith.constant 0 : i32
    %0 = arith.cmpi eq, %arg2, %c0_i32 : i32
    %1 = arith.extui %0 : i1 to i32
    %c0_i32_0 = arith.constant 0 : i32
    %2 = arith.cmpi ne, %1, %c0_i32_0 : i32
    scf.if %2 {
      %cst_10 = arith.constant 0.000000e+00 : f32
      %12 = vector.broadcast %cst_10 : f32 to vector<16x32xf32>
      %c0_11 = arith.constant 0 : index
      %c0_12 = arith.constant 0 : index
      %13 = vector.load %arg12[%c0_11, %c0_12] : memref<16x32xf32, #tpu.memory_space<vmem>>, vector<16x32xf32>
      tpu.vector_store %arg12[%c0_11, %c0_12], %12 {strides = array<i32>} : memref<16x32xf32, #tpu.memory_space<vmem>>, vector<16x32xf32>,
    } else {
    }
    %c0 = arith.constant 0 : index
    %c0_1 = arith.constant 0 : index
    %3 = vector.load %arg12[%c0, %c0_1] : memref<16x32xf32, #tpu.memory_space<vmem>>, vector<16x32xf32>
    %c0_2 = arith.constant 0 : index
    %c0_3 = arith.constant 0 : index
    %4 = vector.load %arg3[%c0_2, %c0_3] : memref<16x64xbf16, #tpu.memory_space<vmem>>, vector<16x64xbf16>
    %c0_4 = arith.constant 0 : index
    %c0_5 = arith.constant 0 : index
    %5 = vector.load %arg4[%c0_4, %c0_5] : memref<64x32xbf16, #tpu.memory_space<vmem>>, vector<64x32xbf16>
    %cst = arith.constant dense<0.000000e+00> : vector<16x32xf32>
    %6 = tpu.matmul %4, %5, %cst {dimension_numbers = #tpu.dot_dimension_numbers<[1], [0], [0], [1], [0, 0, 1, 1], [], []>} : vector<16x64xbf16>, vector<64x32xbf16>, vector<16x32xf32> -> vector<16x32xf32>
    %7 = arith.addf %3, %6 : vector<16x32xf32>
    %c0_6 = arith.constant 0 : index
    %c0_7 = arith.constant 0 : index
    %8 = vector.load %arg12[%c0_6, %c0_7] : memref<16x32xf32, #tpu.memory_space<vmem>>, vector<16x32xf32>
    tpu.vector_store %arg12[%c0_6, %c0_7], %7 {strides = array<i32>} : memref<16x32xf32, #tpu.memory_space<vmem>>, vector<16x32xf32>,
    %c0_i32_8 = arith.constant 0 : i32
    %9 = arith.cmpi eq, %arg2, %c0_i32_8 : i32
    %10 = arith.extui %9 : i1 to i32
    %c0_i32_9 = arith.constant 0 : i32
    %11 = arith.cmpi ne, %10, %c0_i32_9 : i32
    scf.if %11 {
      %c0_10 = arith.constant 0 : index
      %c0_11 = arith.constant 0 : index
      %12 = vector.load %arg12[%c0_10, %c0_11] : memref<16x32xf32, #tpu.memory_space<vmem>>, vector<16x32xf32>
      %c0_12 = arith.constant 0 : index
      %c0_13 = arith.constant 0 : index
      %13 = vector.load %arg5[%c0_12, %c0_13] : memref<1x32xf32, #tpu.memory_space<vmem>>, vector<1x32xf32>
      %14 = vector.broadcast %13 : vector<1x32xf32> to vector<16x32xf32>
      %15 = arith.addf %12, %14 : vector<16x32xf32>
      %c0_14 = arith.constant 0 : index
      %c0_15 = arith.constant 0 : index
      %16 = vector.load %arg6[%c0_14, %c0_15] : memref<16x32xbf16, #tpu.memory_space<vmem>>, vector<16x32xbf16>
      %17 = arith.extf %16 : vector<16x32xbf16> to vector<16x32xf32>
      %18 = arith.addf %15, %17 : vector<16x32xf32>
      %c0_16 = arith.constant 0 : index
      %c0_17 = arith.constant 0 : index
      %19 = vector.load %arg7[%c0_16, %c0_17] : memref<1x32xf32, #tpu.memory_space<vmem>>, vector<1x32xf32>
      %c0_18 = arith.constant 0 : index
      %c0_19 = arith.constant 0 : index
      %20 = vector.load %arg8[%c0_18, %c0_19] : memref<1x32xf32, #tpu.memory_space<vmem>>, vector<1x32xf32>
      %cst_20 = arith.constant dense<0.000000e+00> : vector<16xf32>
      %21 = vector.multi_reduction <add>, %18, %cst_20 [1] : vector<16x32xf32> to vector<16xf32>
      %22 = vector.shape_cast %21 : vector<16xf32> to vector<16x1xf32>
      %cst_21 = arith.constant 3.200000e+01 : f32
      %23 = vector.broadcast %cst_21 : f32 to vector<16x1xf32>
      %24 = arith.divf %22, %23 : vector<16x1xf32>
      %25 = vector.broadcast %24 : vector<16x1xf32> to vector<16x32xf32>
      %26 = arith.subf %18, %25 : vector<16x32xf32>
      %27 = arith.mulf %26, %26 : vector<16x32xf32>
      %cst_22 = arith.constant dense<0.000000e+00> : vector<16xf32>
      %28 = vector.multi_reduction <add>, %27, %cst_22 [1] : vector<16x32xf32> to vector<16xf32>
      %29 = vector.shape_cast %28 : vector<16xf32> to vector<16x1xf32>
      %cst_23 = arith.constant 3.200000e+01 : f32
      %30 = vector.broadcast %cst_23 : f32 to vector<16x1xf32>
      %31 = arith.divf %29, %30 : vector<16x1xf32>
      %32 = vector.broadcast %24 : vector<16x1xf32> to vector<16x32xf32>
      %33 = arith.subf %18, %32 : vector<16x32xf32>
      %cst_24 = arith.constant 9.99999996E-13 : f32
      %34 = vector.broadcast %cst_24 : f32 to vector<16x1xf32>
      %35 = arith.addf %31, %34 : vector<16x1xf32>
      %36 = math.rsqrt %35 : vector<16x1xf32>
      %37 = vector.broadcast %36 : vector<16x1xf32> to vector<16x32xf32>
      %38 = arith.mulf %33, %37 : vector<16x32xf32>
      %39 = vector.broadcast %19 : vector<1x32xf32> to vector<16x32xf32>
      %40 = arith.mulf %38, %39 : vector<16x32xf32>
      %41 = vector.broadcast %20 : vector<1x32xf32> to vector<16x32xf32>
      %42 = arith.addf %40, %41 : vector<16x32xf32>
      %43 = arith.truncf %42 : vector<16x32xf32> to vector<16x32xbf16>
      %c0_25 = arith.constant 0 : index
      %c0_26 = arith.constant 0 : index
      %44 = vector.load %arg9[%c0_25, %c0_26] : memref<32x128xbf16, #tpu.memory_space<vmem>>, vector<32x128xbf16>
      %cst_27 = arith.constant dense<0.000000e+00> : vector<16x128xf32>
      %45 = tpu.matmul %43, %44, %cst_27 {dimension_numbers = #tpu.dot_dimension_numbers<[1], [0], [0], [1], [0, 0, 1, 1], [], []>} : vector<16x32xbf16>, vector<32x128xbf16>, vector<16x128xf32> -> vector<16x128xf32>
      %c0_28 = arith.constant 0 : index
      %c0_29 = arith.constant 0 : index
      %46 = vector.load %arg10[%c0_28, %c0_29] : memref<1x128xf32, #tpu.memory_space<vmem>>, vector<1x128xf32>
      %47 = vector.broadcast %46 : vector<1x128xf32> to vector<16x128xf32>
      %48 = arith.addf %45, %47 : vector<16x128xf32>
      %c0_30 = arith.constant 0 : index
      %c0_31 = arith.constant 0 : index
      %49 = vector.load %arg11[%c0_30, %c0_31] : memref<16x128xf32, #tpu.memory_space<vmem>>, vector<16x128xf32>
      tpu.vector_store %arg11[%c0_30, %c0_31], %48 {strides = array<i32>} : memref<16x128xf32, #tpu.memory_space<vmem>>, vector<16x128xf32>,
    } else {
    }
    return
  }
  func.func @transform_0(%arg0: i32, %arg1: i32, %arg2: i32) -> (i32, i32) {
    %c0_i32 = arith.constant 0 : i32
    return %arg0, %arg2 : i32, i32
  }
  func.func @transform_1(%arg0: i32, %arg1: i32, %arg2: i32) -> (i32, i32) {
    %c0_i32 = arith.constant 0 : i32
    return %arg2, %arg1 : i32, i32
  }
  func.func @transform_2(%arg0: i32, %arg1: i32, %arg2: i32) -> (i32, i32) {
    %c0_i32 = arith.constant 0 : i32
    %c0_i32_0 = arith.constant 0 : i32
    return %c0_i32, %arg1 : i32, i32
  }
  func.func @transform_3(%arg0: i32, %arg1: i32, %arg2: i32) -> (i32, i32) {
    %c0_i32 = arith.constant 0 : i32
    return %arg0, %arg1 : i32, i32
  }
  func.func @transform_4(%arg0: i32, %arg1: i32, %arg2: i32) -> (i32, i32) {
    %c0_i32 = arith.constant 0 : i32
    %c0_i32_0 = arith.constant 0 : i32
    return %c0_i32, %arg1 : i32, i32
  }
  func.func @transform_5(%arg0: i32, %arg1: i32, %arg2: i32) -> (i32, i32) {
    %c0_i32 = arith.constant 0 : i32
    %c0_i32_0 = arith.constant 0 : i32
    return %c0_i32, %arg1 : i32, i32
  }
  func.func @transform_6(%arg0: i32, %arg1: i32, %arg2: i32) -> (i32, i32) {
    %c0_i32 = arith.constant 0 : i32
    %c0_i32_0 = arith.constant 0 : i32
    return %arg1, %c0_i32 : i32, i32
  }
  func.func @transform_7(%arg0: i32, %arg1: i32, %arg2: i32) -> (i32, i32) {
    %c0_i32 = arith.constant 0 : i32
    %c0_i32_0 = arith.constant 0 : i32
    %c0_i32_1 = arith.constant 0 : i32
    return %c0_i32, %c0_i32_0 : i32, i32
  }
  func.func @transform_8(%arg0: i32, %arg1: i32, %arg2: i32) -> (i32, i32) {
    %c0_i32 = arith.constant 0 : i32
    %c0_i32_0 = arith.constant 0 : i32
    return %arg0, %c0_i32 : i32, i32
  }
}

module attributes {stable_mosaic.version = 11 : i64} {
  func.func @_crf_kernel(%arg0: memref<8x2x4xf32, #tpu.memory_space<vmem>>, %arg1: memref<8x2x4xf32, #tpu.memory_space<vmem>>, %arg2: memref<4x4xf32, #tpu.memory_space<vmem>>, %arg3: memref<1x4xf32, #tpu.memory_space<vmem>>, %arg4: memref<1x4xf32, #tpu.memory_space<vmem>>, %arg5: memref<2x1xf32, #tpu.memory_space<vmem>>) attributes {dimension_semantics = [], scalar_prefetch = 0 : i64, scratch_operands = 0 : i64, tpu.core_type = #tpu.core_type<tc>} {
    %c0 = arith.constant 0 : index
    %c0_0 = arith.constant 0 : index
    %c0_1 = arith.constant 0 : index
    %0 = vector.load %arg0[%c0, %c0_0, %c0_1] : memref<8x2x4xf32, #tpu.memory_space<vmem>>, vector<8x2x4xf32>
    %c0_2 = arith.constant 0 : index
    %c0_3 = arith.constant 0 : index
    %c0_4 = arith.constant 0 : index
    %1 = vector.load %arg1[%c0_2, %c0_3, %c0_4] : memref<8x2x4xf32, #tpu.memory_space<vmem>>, vector<8x2x4xf32>
    %c0_5 = arith.constant 0 : index
    %c0_6 = arith.constant 0 : index
    %2 = vector.load %arg2[%c0_5, %c0_6] : memref<4x4xf32, #tpu.memory_space<vmem>>, vector<4x4xf32>
    %c0_7 = arith.constant 0 : index
    %c0_8 = arith.constant 0 : index
    %3 = vector.load %arg3[%c0_7, %c0_8] : memref<1x4xf32, #tpu.memory_space<vmem>>, vector<1x4xf32>
    %c0_9 = arith.constant 0 : index
    %c0_10 = arith.constant 0 : index
    %4 = vector.load %arg4[%c0_9, %c0_10] : memref<1x4xf32, #tpu.memory_space<vmem>>, vector<1x4xf32>
    %5 = arith.mulf %0, %1 : vector<8x2x4xf32>
    %cst = arith.constant dense<0.000000e+00> : vector<2x4xf32>
    %6 = vector.multi_reduction <add>, %5, %cst [0] : vector<8x2x4xf32> to vector<2x4xf32>
    %cst_11 = arith.constant dense<0.000000e+00> : vector<2xf32>
    %7 = vector.multi_reduction <add>, %6, %cst_11 [1] : vector<2x4xf32> to vector<2xf32>
    %8 = vector.shape_cast %7 : vector<2xf32> to vector<2x1xf32>
    %9 = vector.extract_strided_slice %1 {offsets = [0, 0, 0], sizes = [7, 2, 4], strides = [1, 1, 1]} : vector<8x2x4xf32> to vector<7x2x4xf32>
    %10 = vector.shape_cast %9 : vector<7x2x4xf32> to vector<14x4xf32>
    %11 = vector.extract_strided_slice %1 {offsets = [1, 0, 0], sizes = [7, 2, 4], strides = [1, 1, 1]} : vector<8x2x4xf32> to vector<7x2x4xf32>
    %cst_12 = arith.constant dense<0.000000e+00> : vector<14x4xf32>
    %12 = tpu.matmul %10, %2, %cst_12 {dimension_numbers = #tpu.dot_dimension_numbers<[1], [0], [0], [1], [0, 0, 1, 1], [], []>} : vector<14x4xf32>, vector<4x4xf32>, vector<14x4xf32> -> vector<14x4xf32>
    %13 = vector.shape_cast %12 : vector<14x4xf32> to vector<7x2x4xf32>
    %14 = arith.mulf %13, %11 : vector<7x2x4xf32>
    %cst_13 = arith.constant dense<0.000000e+00> : vector<2x4xf32>
    %15 = vector.multi_reduction <add>, %14, %cst_13 [0] : vector<7x2x4xf32> to vector<2x4xf32>
    %cst_14 = arith.constant dense<0.000000e+00> : vector<2xf32>
    %16 = vector.multi_reduction <add>, %15, %cst_14 [1] : vector<2x4xf32> to vector<2xf32>
    %17 = vector.shape_cast %16 : vector<2xf32> to vector<2x1xf32>
    %18 = vector.extract_strided_slice %1 {offsets = [0, 0, 0], sizes = [1, 2, 4], strides = [1, 1, 1]} : vector<8x2x4xf32> to vector<1x2x4xf32>
    %19 = vector.shape_cast %18 : vector<1x2x4xf32> to vector<2x4xf32>
    %20 = vector.broadcast %3 : vector<1x4xf32> to vector<2x4xf32>
    %21 = arith.mulf %19, %20 : vector<2x4xf32>
    %cst_15 = arith.constant dense<0.000000e+00> : vector<2xf32>
    %22 = vector.multi_reduction <add>, %21, %cst_15 [1] : vector<2x4xf32> to vector<2xf32>
    %23 = vector.shape_cast %22 : vector<2xf32> to vector<2x1xf32>
    %24 = vector.extract_strided_slice %1 {offsets = [7, 0, 0], sizes = [1, 2, 4], strides = [1, 1, 1]} : vector<8x2x4xf32> to vector<1x2x4xf32>
    %25 = vector.shape_cast %24 : vector<1x2x4xf32> to vector<2x4xf32>
    %26 = vector.broadcast %4 : vector<1x4xf32> to vector<2x4xf32>
    %27 = arith.mulf %25, %26 : vector<2x4xf32>
    %cst_16 = arith.constant dense<0.000000e+00> : vector<2xf32>
    %28 = vector.multi_reduction <add>, %27, %cst_16 [1] : vector<2x4xf32> to vector<2xf32>
    %29 = vector.shape_cast %28 : vector<2xf32> to vector<2x1xf32>
    %30 = arith.addf %8, %17 : vector<2x1xf32>
    %31 = arith.addf %30, %23 : vector<2x1xf32>
    %32 = arith.addf %31, %29 : vector<2x1xf32>
    %33 = tpu.transpose %2, [1, 0] : vector<4x4xf32> -> vector<4x4xf32>
    %34 = vector.extract_strided_slice %0 {offsets = [0, 0, 0], sizes = [1, 2, 4], strides = [1, 1, 1]} : vector<8x2x4xf32> to vector<1x2x4xf32>
    %35 = vector.shape_cast %34 : vector<1x2x4xf32> to vector<2x4xf32>
    %36 = vector.broadcast %3 : vector<1x4xf32> to vector<2x4xf32>
    %37 = arith.addf %36, %35 : vector<2x4xf32>
    %c1_i32 = arith.constant 1 : i32
    %c7_i32 = arith.constant 7 : i32
    %38 = arith.addi %c1_i32, %c7_i32 : i32
    %c1_i32_17 = arith.constant 1 : i32
    %39 = scf.for %arg6 = %c1_i32 to %38 step %c1_i32_17 iter_args(%arg7 = %37) -> (vector<2x4xf32>)  : i32 {
      %53 = arith.index_cast %arg6 : i32 to index
      %c0_23 = arith.constant 0 : index
      %c0_24 = arith.constant 0 : index
      %54 = vector.load %arg0[%53, %c0_23, %c0_24] : memref<8x2x4xf32, #tpu.memory_space<vmem>>, vector<1x2x4xf32>
      %55 = vector.shape_cast %54 : vector<1x2x4xf32> to vector<2x4xf32>
      %56 = vector.shape_cast %arg7 : vector<2x4xf32> to vector<2x1x4xf32>
      %57 = vector.shape_cast %33 : vector<4x4xf32> to vector<1x4x4xf32>
      %58 = vector.broadcast %56 : vector<2x1x4xf32> to vector<2x4x4xf32>
      %59 = vector.broadcast %57 : vector<1x4x4xf32> to vector<2x4x4xf32>
      %60 = arith.addf %58, %59 : vector<2x4x4xf32>
      %cst_25 = arith.constant dense<0xFF800000> : vector<2x4xf32>
      %61 = vector.multi_reduction <maximumf>, %60, %cst_25 [2] : vector<2x4x4xf32> to vector<2x4xf32>
      %62 = vector.shape_cast %61 : vector<2x4xf32> to vector<2x4x1xf32>
      %63 = vector.shape_cast %62 : vector<2x4x1xf32> to vector<2x4xf32>
      %64 = vector.broadcast %62 : vector<2x4x1xf32> to vector<2x4x4xf32>
      %65 = arith.subf %60, %64 : vector<2x4x4xf32>
      %66 = math.exp %65 : vector<2x4x4xf32>
      %cst_26 = arith.constant dense<0.000000e+00> : vector<2x4xf32>
      %67 = vector.multi_reduction <add>, %66, %cst_26 [2] : vector<2x4x4xf32> to vector<2x4xf32>
      %68 = math.log %67 : vector<2x4xf32>
      %69 = arith.addf %63, %68 : vector<2x4xf32>
      %70 = arith.addf %69, %55 : vector<2x4xf32>
      scf.yield %70 : vector<2x4xf32>
    }
    %c7_i32_18 = arith.constant 7 : i32
    %40 = vector.broadcast %4 : vector<1x4xf32> to vector<2x4xf32>
    %41 = arith.addf %39, %40 : vector<2x4xf32>
    %cst_19 = arith.constant dense<0xFF800000> : vector<2xf32>
    %42 = vector.multi_reduction <maximumf>, %41, %cst_19 [1] : vector<2x4xf32> to vector<2xf32>
    %43 = vector.shape_cast %42 : vector<2xf32> to vector<2x1xf32>
    %44 = vector.broadcast %43 : vector<2x1xf32> to vector<2x4xf32>
    %45 = arith.subf %41, %44 : vector<2x4xf32>
    %46 = math.exp %45 : vector<2x4xf32>
    %cst_20 = arith.constant dense<0.000000e+00> : vector<2xf32>
    %47 = vector.multi_reduction <add>, %46, %cst_20 [1] : vector<2x4xf32> to vector<2xf32>
    %48 = vector.shape_cast %47 : vector<2xf32> to vector<2x1xf32>
    %49 = math.log %48 : vector<2x1xf32>
    %50 = arith.addf %43, %49 : vector<2x1xf32>
    %51 = arith.subf %32, %50 : vector<2x1xf32>
    %c0_21 = arith.constant 0 : index
    %c0_22 = arith.constant 0 : index
    %52 = vector.load %arg5[%c0_21, %c0_22] : memref<2x1xf32, #tpu.memory_space<vmem>>, vector<2x1xf32>
    tpu.vector_store %arg5[%c0_21, %c0_22], %51 {strides = array<i32>} : memref<2x1xf32, #tpu.memory_space<vmem>>, vector<2x1xf32>,
    return
  }
}

</mosaic_0001>

<llo_original>
// kernel: groie_forward.18
$region0: #{groie_forward.18}
  #allocation0 [shape = 'u32[]', space=smem, size = 0x4, offset = 0x4, fixed_abs, tag = 'smem constant byte address 0x4 - core index']
  #allocation1 [shape = 'u32[144,128]{1,0:T(1,128)}', space=vmem, size = 0x12000, scoped, tag = 'internal scratch']
  #allocation2 [shape = 'f32[16,96]{1,0:T(8,128)}', space=vmem, size = 0x2000, scoped, tag = 'scratch operand']
  %s0 = inlined_call_operand.vmem [shape: bf16[16,32], index: 0, kind: input, shape index: {}]
  %s1 = inlined_call_operand.vmem [shape: bf16[32,96], index: 1, kind: input, shape index: {}]
  %s2 = inlined_call_operand.vmem [shape: f32[1,96], index: 2, kind: input, shape index: {}]
  %s3 = inlined_call_operand.vmem [shape: bf16[16,96], index: 3, kind: output, shape index: {}]
  %s4 = sld [smem:[#allocation0]]
  $region30: #{groie_forward.18} parent=0
    _
  %s6 = ssub.s32 1, %s4
  %s7 = scalar_select 0, %s6, %s4
  // Predicated region
  $region2: #{groie_forward.18} parent=0 // pred_check
    _
  $region3: #{groie_forward.18} parent=0 // pred_check_branch
    %9 = sbr.rel (0) target = $region5
  $region4: #{groie_forward.18} parent=0 // pred_region
    _
  $region5: #{groie_forward.18} parent=0 // pred_fallthru
    _
  // Predicated region
  $region6: #{groie_forward.18} parent=0 // pred_check
    _
  $region7: #{groie_forward.18} parent=0 // pred_check_branch
    %11 = sbr.rel (0) target = $region9
  $region8: #{groie_forward.18} parent=0 // pred_region
    _
  $region9: #{groie_forward.18} parent=0 // pred_fallthru
    _
  // Predicated region
  $region10: #{groie_forward.18} parent=0 // pred_check
    _
  $region11: #{groie_forward.18} parent=0 // pred_check_branch
    %13 = sbr.rel (0) target = $region13
  $region12: #{groie_forward.18} parent=0 // pred_region
    _
  $region13: #{groie_forward.18} parent=0 // pred_fallthru
    _
  %p15 = scmp.eq.s32.totalorder 0, 0
  // Predicated region
  $region14: #{groie_forward.18} parent=0 // pred_check
    %p16 = pneg %p15
  $region15: #{groie_forward.18} parent=0 // pred_check_branch
    %18 = sbr.rel (%p16) target = $region17
  $region16: #{groie_forward.18} parent=0 // pred_region
    %vm19 = vcmask 785408
    %20 = vst.msk [vmem:[#allocation2] sm:$0xff] %vm19, 0.0
    %21 = vst.msk [vmem:[#allocation2 + $0x8] sm:$0xff] %vm19, 0.0
  $region17: #{groie_forward.18} parent=0 // pred_fallthru
    _
  %v22 = vld [vmem:[#allocation2] sm:$0xff]
  %v23 = vld [vmem:[#allocation2 + $0x8] sm:$0xff]
  %v24 = vld [vmem:[%s0] sm:$0xf]
  %v25 = vld [vmem:[%s0 + $0x4] sm:$0xf]
  %v26 = vld [vmem:[%s1] sm:$0xf]
  %v27 = vld [vmem:[%s1 + $0x4] sm:$0xf]
  %v28 = vld [vmem:[%s1 + $0x8] sm:$0xf]
  %v29 = vld [vmem:[%s1 + $0xc] sm:$0xf]
  %v32 = vunpack.c.l.b16 %v24
  %v33 = vunpack.c.l.b16 %v25
  %v34 = vpack.c.b16 %v33, %v32
  %v39 = vunpack.c.l.b16 %v26
  %v40 = vunpack.c.l.b16 %v27
  %v41 = vunpack.c.l.b16 %v28
  %v42 = vunpack.c.l.b16 %v29
  %v43 = vpack.c.b16 %v40, %v39
  %v44 = vpack.c.b16 %v42, %v41
  %vm47 = vcmask 261120
  %v49 = vsel %vm47, %v34, 0
  %51 = vmatprep.subr.bf16.mxu0 0
  %52 = vmatpush1.bf16.msra.mxu0 0
  %53 = vmatprep.subr.bf16.mxu0 0
  %54 = vmatpush1.bf16.msra.mxu0 0
  %55 = vmatprep.subr.bf16.mxu0 0
  %56 = vmatpush1.bf16.msra.mxu0 0
  %57 = vmatprep.subr.bf16.mxu0 0
  %58 = vmatpush1.bf16.msra.mxu0 0
  %59 = vmatprep.subr.bf16.mxu0 0
  %60 = vmatpush1.bf16.msra.mxu0 0
  %61 = vmatprep.subr.bf16.mxu0 0
  %62 = vmatpush1.bf16.msra.mxu0 0
  %63 = vmatprep.subr.bf16.mxu0 0
  %64 = vmatpush1.bf16.msra.mxu0 %v44
  %65 = vmatprep.subr.bf16.mxu0 0
  %66 = vmatpush1.bf16.msra.mxu0 %v43
  %67 = vmatprep.subr.bf16.mxu0 0
  %68 = vmatpush2.bf16.msra.mxu0 0
  %69 = vmatprep.subr.bf16.mxu0 0
  %70 = vmatpush2.bf16.msra.mxu0 0
  %71 = vmatprep.subr.bf16.mxu0 0
  %72 = vmatpush2.bf16.msra.mxu0 0
  %73 = vmatprep.subr.bf16.mxu0 0
  %74 = vmatpush2.bf16.msra.mxu0 0
  %75 = vmatprep.subr.bf16.mxu0 0
  %76 = vmatpush2.bf16.msra.mxu0 0
  %77 = vmatprep.subr.bf16.mxu0 0
  %78 = vmatpush2.bf16.msra.mxu0 0
  %79 = vmatprep.subr.bf16.mxu0 0
  %80 = vmatpush2.bf16.msra.mxu0 0
  %81 = vmatprep.subr.bf16.mxu0 0
  %82 = vmatpush2.bf16.msra.mxu0 0
  %83 = vmatprep.mubr.bf16.mxu0 0
  %84 = vmatmul.mubr.bf16.gmra.mxu0 %v49
  %v85 = vpop.f32.mrf.mxu0
  %v86 = vadd.f32 0.0, %v85
  %v87 = vpop.f32.mrf.mxu0
  %v88 = vpop.f32.mrf.mxu0
  %v89 = vadd.f32 0.0, %v88
  %v90 = vpop.f32.mrf.mxu0
  %91 = vdwg.mxu0
  %v92 = vadd.f32 %v22, %v86
  %v93 = vadd.f32 %v23, %v89
  %vm94 = vcmask 785408
  %95 = vst.msk [vmem:[#allocation2] sm:$0xff] %vm94, %v92
  %96 = vst.msk [vmem:[#allocation2 + $0x8] sm:$0xff] %vm94, %v93
  // Predicated region
  $region18: #{groie_forward.18} parent=0 // pred_check
    %p97 = pneg %p15
  $region19: #{groie_forward.18} parent=0 // pred_check_branch
    %99 = sbr.rel (%p97) target = $region21
  $region20: #{groie_forward.18} parent=0 // pred_region
    %v100 = vld [vmem:[#allocation2] sm:$0xff]
    %v101 = vld [vmem:[#allocation2 + $0x8] sm:$0xff]
    %v102 = vld [vmem:[%s2] sm:$0x1]
    %v104 = vlaneseq
    %v105 = vshrl.u32 %v104, 7
    %v106 = vsub.s32 0, %v105
    %v107 = vrot.slane %v102, %v106
    %v109 = vadd.f32 %v100, %v107
    %v110 = vadd.f32 %v101, %v107
    %v111 = vpack.c.bf16 %v110, %v109
    %v113 = vunpack.c.l.b16 %v111
    %v114 = vunpack.c.h.b16 %v111
    %v115 = vpack.c.b16 %v113, %v113
    %v116 = vpack.c.b16 %v114, %v114
    %vm119 = vcmask 781312
    %120 = vst.msk [vmem:[%s3] sm:$0xf] %vm119, %v115
    %121 = vst.msk [vmem:[%s3 + $0x4] sm:$0xf] %vm119, %v116
  $region21: #{groie_forward.18} parent=0 // pred_fallthru
    _
  // Predicated region
  $region22: #{groie_forward.18} parent=0 // pred_check
    _
  $region23: #{groie_forward.18} parent=0 // pred_check_branch
    %123 = sbr.rel (0) target = $region25
  $region24: #{groie_forward.18} parent=0 // pred_region
    _
  $region25: #{groie_forward.18} parent=0 // pred_fallthru
    _
  // Predicated region
  $region26: #{groie_forward.18} parent=0 // pred_check
    _
  $region27: #{groie_forward.18} parent=0 // pred_check_branch
    %125 = sbr.rel (0) target = $region29
  $region28: #{groie_forward.18} parent=0 // pred_region
    _
  $region29: #{groie_forward.18} parent=0 // pred_fallthru
    _

// kernel: groie_forward.19
$region0: #{groie_forward.19}
  #allocation0 [shape = 'u32[]', space=smem, size = 0x4, offset = 0x4, fixed_abs, tag = 'smem constant byte address 0x4 - core index']
  #allocation1 [shape = 'u32[144,128]{1,0:T(1,128)}', space=vmem, size = 0x12000, scoped, tag = 'internal scratch']
  %s0 = inlined_call_operand.vmem [shape: bf16[3,2,4,8,8], index: 0, kind: input, shape index: {}, may-alias: {0,1,2}]
  %s1 = inlined_call_operand.vmem [shape: bf16[3,2,4,8,8], index: 1, kind: input, shape index: {}, may-alias: {0,1,2}]
  %s2 = inlined_call_operand.vmem [shape: bf16[3,2,4,8,8], index: 2, kind: input, shape index: {}, may-alias: {0,1,2}]
  %s3 = inlined_call_operand.vmem [shape: f32[2,1,8], index: 3, kind: input, shape index: {}]
  %s4 = inlined_call_operand.vmem [shape: bf16[2,4,8,8], index: 4, kind: output, shape index: {}]
  %s5 = sld [smem:[#allocation0]]
  $region49: #{groie_forward.19} parent=0
    _
  %s7 = ssub.s32 1, %s5
  %s8 = scalar_select 0, %s7, %s5
  loop: start=0, step=1, limit=10
  $region2: #{groie_forward.19} parent=0 // loop_pre_header
    _
  $region3: #{groie_forward.19} parent=0 // loop_header
    %s10 = sphi 0, %s14
    %p11 = scmp.ge.s32.totalorder %s10, 10
    %s17 = sphi 0, %s29
    %s18 = sphi 0, %s25
    %s19 = sphi 0, %s17
    %s20 = sphi 0, %s18
    %s21 = sphi 0, %s19
    %s22 = sphi 0, %s20
    %s34 = sphi 0, %s36
    %s37 = sphi 0, %s34
    %s38 = sphi 0, %s37
    %s54 = sphi 0, %s38
    %s62 = sphi 0, %s64
    %s65 = sphi 0, %s62
    %s66 = sphi 0, %s65
    %s82 = sphi 0, %s66
    %s90 = sphi 0, %s92
    %s93 = sphi 0, %s90
    %s94 = sphi 0, %s93
    %s110 = sphi 0, %s94
    %s116 = sphi 0, %s118
    %s119 = sphi 0, %s116
    %s120 = sphi 0, %s119
    %s136 = sphi 0, %s120
    %s144 = sphi 0, %s146
    %s147 = sphi 0, %s144
    %s148 = sphi 0, %s147
    %s164 = sphi 0, %s148
  $region4: #{groie_forward.19} parent=0 // loop_header_branch
    %13 = sbr.rel (%p11) target = $region8
  $region5: #{groie_forward.19} parent=0 // loop_body
    %s15 = ssub.s32 %s10, 1
    %s16 = ssub.s32 %s10, 2
    %s23 = sadd.s32 1, %s18
    %p24 = scmp.ge.s32.totalorder %s23, 4
    %s25 = scalar_select %p24, 0, %s23
    %s26 = sadd.s32 1, %s17
    %s27 = scalar_select %p24, %s26, %s17
    %p28 = scmp.ge.s32.totalorder %s27, 2
    %s29 = scalar_select %p28, 0, %s27
    %s30 = ssub.s32 %s17, %s29
    %s31 = ssub.s32 %s18, %s25
    %s32 = sor.u32 %s30, %s31
    %p33 = scmp.eq.s32.totalorder %s32, 0
    %s35 = sadd.s32 %s34, 1
    %s36 = scalar_select %p33, %s34, %s35
    %p39 = pneg %p33
    %p40 = scmp.eq.s32.totalorder %s10, 7
    %p41 = por %p39, %p40
    %p42 = scmp.ne.s32.totalorder %s34, %s37
    %p43 = scmp.eq.s32.totalorder %s10, 0
    %p44 = por %p42, %p43
    %p45 = scmp.ne.s32.totalorder %s34, %s37
    %p46 = scmp.eq.s32.totalorder %s15, 7
    %p47 = por %p45, %p46
    %p48 = scmp.ne.s32.totalorder %s37, %s38
    %p49 = scmp.eq.s32.totalorder %s15, 0
    %p50 = por %p48, %p49
    %p51 = scmp.ne.s32.totalorder %s37, %s38
    %p52 = scmp.eq.s32.totalorder %s16, 7
    %p53 = por %p51, %p52
    %p55 = scmp.ne.s32.totalorder %s38, %s54
    %p56 = scmp.eq.s32.totalorder %s16, 0
    %p57 = por %p55, %p56
    %s58 = ssub.s32 %s17, %s29
    %s59 = ssub.s32 %s18, %s25
    %s60 = sor.u32 %s58, %s59
    %p61 = scmp.eq.s32.totalorder %s60, 0
    %s63 = sadd.s32 %s62, 1
    %s64 = scalar_select %p61, %s62, %s63
    %p67 = pneg %p61
    %p68 = scmp.eq.s32.totalorder %s10, 7
    %p69 = por %p67, %p68
    %p70 = scmp.ne.s32.totalorder %s62, %s65
    %p71 = scmp.eq.s32.totalorder %s10, 0
    %p72 = por %p70, %p71
    %p73 = scmp.ne.s32.totalorder %s62, %s65
    %p74 = scmp.eq.s32.totalorder %s15, 7
    %p75 = por %p73, %p74
    %p76 = scmp.ne.s32.totalorder %s65, %s66
    %p77 = scmp.eq.s32.totalorder %s15, 0
    %p78 = por %p76, %p77
    %p79 = scmp.ne.s32.totalorder %s65, %s66
    %p80 = scmp.eq.s32.totalorder %s16, 7
    %p81 = por %p79, %p80
    %p83 = scmp.ne.s32.totalorder %s66, %s82
    %p84 = scmp.eq.s32.totalorder %s16, 0
    %p85 = por %p83, %p84
    %s86 = ssub.s32 %s17, %s29
    %s87 = ssub.s32 %s18, %s25
    %s88 = sor.u32 %s86, %s87
    %p89 = scmp.eq.s32.totalorder %s88, 0
    %s91 = sadd.s32 %s90, 1
    %s92 = scalar_select %p89, %s90, %s91
    %p95 = pneg %p89
    %p96 = scmp.eq.s32.totalorder %s10, 7
    %p97 = por %p95, %p96
    %p98 = scmp.ne.s32.totalorder %s90, %s93
    %p99 = scmp.eq.s32.totalorder %s10, 0
    %p100 = por %p98, %p99
    %p101 = scmp.ne.s32.totalorder %s90, %s93
    %p102 = scmp.eq.s32.totalorder %s15, 7
    %p103 = por %p101, %p102
    %p104 = scmp.ne.s32.totalorder %s93, %s94
    %p105 = scmp.eq.s32.totalorder %s15, 0
    %p106 = por %p104, %p105
    %p107 = scmp.ne.s32.totalorder %s93, %s94
    %p108 = scmp.eq.s32.totalorder %s16, 7
    %p109 = por %p107, %p108
    %p111 = scmp.ne.s32.totalorder %s94, %s110
    %p112 = scmp.eq.s32.totalorder %s16, 0
    %p113 = por %p111, %p112
    %s114 = ssub.s32 %s17, %s29
    %p115 = scmp.eq.s32.totalorder %s114, 0
    %s117 = sadd.s32 %s116, 1
    %s118 = scalar_select %p115, %s116, %s117
    %p121 = pneg %p115
    %p122 = scmp.eq.s32.totalorder %s10, 7
    %p123 = por %p121, %p122
    %p124 = scmp.ne.s32.totalorder %s116, %s119
    %p125 = scmp.eq.s32.totalorder %s10, 0
    %p126 = por %p124, %p125
    %p127 = scmp.ne.s32.totalorder %s116, %s119
    %p128 = scmp.eq.s32.totalorder %s15, 7
    %p129 = por %p127, %p128
    %p130 = scmp.ne.s32.totalorder %s119, %s120
    %p131 = scmp.eq.s32.totalorder %s15, 0
    %p132 = por %p130, %p131
    %p133 = scmp.ne.s32.totalorder %s119, %s120
    %p134 = scmp.eq.s32.totalorder %s16, 7
    %p135 = por %p133, %p134
    %p137 = scmp.ne.s32.totalorder %s120, %s136
    %p138 = scmp.eq.s32.totalorder %s16, 0
    %p139 = por %p137, %p138
    %s140 = ssub.s32 %s17, %s29
    %s141 = ssub.s32 %s18, %s25
    %s142 = sor.u32 %s140, %s141
    %p143 = scmp.eq.s32.totalorder %s142, 0
    %s145 = sadd.s32 %s144, 1
    %s146 = scalar_select %p143, %s144, %s145
    %p149 = pneg %p143
    %p150 = scmp.eq.s32.totalorder %s10, 7
    %p151 = por %p149, %p150
    %p152 = scmp.ne.s32.totalorder %s144, %s147
    %p153 = scmp.eq.s32.totalorder %s10, 0
    %p154 = por %p152, %p153
    %p155 = scmp.ne.s32.totalorder %s144, %s147
    %p156 = scmp.eq.s32.totalorder %s15, 7
    %p157 = por %p155, %p156
    %p158 = scmp.ne.s32.totalorder %s147, %s148
    %p159 = scmp.eq.s32.totalorder %s15, 0
    %p160 = por %p158, %p159
    %p161 = scmp.ne.s32.totalorder %s147, %s148
    %p162 = scmp.eq.s32.totalorder %s16, 7
    %p163 = por %p161, %p162
    %p165 = scmp.ne.s32.totalorder %s148, %s164
    %p166 = scmp.eq.s32.totalorder %s16, 0
    %p167 = por %p165, %p166
    %p168 = scmp.le.s32.totalorder 1, %s10
    %p169 = scmp.lt.s32.totalorder %s10, 9
    %p170 = pnand %p168, %p169
    %p171 = pneg %p170
    // Predicated region
    $region9: #{groie_forward.19} parent=5 // pred_check
      _
    $region10: #{groie_forward.19} parent=5 // pred_check_branch
      %173 = sbr.rel (%p170) target = $region12
    $region11: #{groie_forward.19} parent=5 // pred_region
      %s174 = ssub.s32 %s10, 1
    $region12: #{groie_forward.19} parent=5 // pred_fallthru
      _
    %p175 = scmp.lt.s32.totalorder %s10, 8
    // Predicated region
    $region13: #{groie_forward.19} parent=5 // pred_check
      %p176 = pneg %p175
    $region14: #{groie_forward.19} parent=5 // pred_check_branch
      %178 = sbr.rel (%p176) target = $region16
    $region15: #{groie_forward.19} parent=5 // pred_region
      // Predicated region
      $region17: #{groie_forward.19} parent=15 // pred_check
        %p179 = pneg %p44
      $region18: #{groie_forward.19} parent=15 // pred_check_branch
        %181 = sbr.rel (%p179) target = $region20
      $region19: #{groie_forward.19} parent=15 // pred_region
        %p182 = scmp.lt.s32.totalorder %s17, 1
        %s183 = scalar_select %p182, %s17, 1
        %p184 = scmp.lt.s32.totalorder %s18, 3
        %s185 = scalar_select %p184, %s18, 3
        %s186 = smul.addr %s183, 4
        %s187 = sadd.s32 %s185, %s186
        %s188 = smul.addr %s187, 4
        %s189 = scalar_lea.vmem %s0, %s188
      $region20: #{groie_forward.19} parent=15 // pred_fallthru
        _
      // Predicated region
      $region21: #{groie_forward.19} parent=15 // pred_check
        %p190 = pneg %p72
      $region22: #{groie_forward.19} parent=15 // pred_check_branch
        %192 = sbr.rel (%p190) target = $region24
      $region23: #{groie_forward.19} parent=15 // pred_region
        %p193 = scmp.lt.s32.totalorder %s17, 1
        %s194 = scalar_select %p193, %s17, 1
        %p195 = scmp.lt.s32.totalorder %s18, 3
        %s196 = scalar_select %p195, %s18, 3
        %s197 = smul.addr %s194, 4
        %s198 = sadd.s32 %s196, %s197
        %s199 = sadd.s32 %s198, 8
        %s200 = smul.addr %s199, 4
        %s201 = scalar_lea.vmem %s1, %s200
      $region24: #{groie_forward.19} parent=15 // pred_fallthru
        _
      // Predicated region
      $region25: #{groie_forward.19} parent=15 // pred_check
        %p202 = pneg %p100
      $region26: #{groie_forward.19} parent=15 // pred_check_branch
        %204 = sbr.rel (%p202) target = $region28
      $region27: #{groie_forward.19} parent=15 // pred_region
        %p205 = scmp.lt.s32.totalorder %s17, 1
        %s206 = scalar_select %p205, %s17, 1
        %p207 = scmp.lt.s32.totalorder %s18, 3
        %s208 = scalar_select %p207, %s18, 3
        %s209 = smul.addr %s206, 4
        %s210 = sadd.s32 %s208, %s209
        %s211 = sadd.s32 %s210, 16
        %s212 = smul.addr %s211, 4
        %s213 = scalar_lea.vmem %s2, %s212
      $region28: #{groie_forward.19} parent=15 // pred_fallthru
        _
      // Predicated region
      $region29: #{groie_forward.19} parent=15 // pred_check
        %p214 = pneg %p126
      $region30: #{groie_forward.19} parent=15 // pred_check_branch
        %216 = sbr.rel (%p214) target = $region32
      $region31: #{groie_forward.19} parent=15 // pred_region
        %p217 = scmp.lt.s32.totalorder %s17, 1
        %s218 = scalar_select %p217, %s17, 1
        %s219 = scalar_lea.vmem %s3, %s218
      $region32: #{groie_forward.19} parent=15 // pred_fallthru
        _
    $region16: #{groie_forward.19} parent=5 // pred_fallthru
      _
    %p220 = scmp.le.s32.totalorder 1, %s10
    %p221 = scmp.lt.s32.totalorder %s10, 9
    %p222 = pnand %p220, %p221
    %p223 = pneg %p222
    // Predicated region
    $region33: #{groie_forward.19} parent=5 // pred_check
      _
    $region34: #{groie_forward.19} parent=5 // pred_check_branch
      %225 = sbr.rel (%p222) target = $region36
    $region35: #{groie_forward.19} parent=5 // pred_region
      %s226 = ssub.s32 %s10, 1
      %p227 = scmp.lt.s32.totalorder %s19, 1
      %s228 = scalar_select %p227, %s19, 1
      %p229 = scmp.lt.s32.totalorder %s20, 3
      %s230 = scalar_select %p229, %s20, 3
      %s231 = smul.addr %s228, 4
      %s232 = sadd.s32 %s230, %s231
      %s233 = smul.addr %s232, 4
      %s234 = scalar_lea.vmem %s0, %s233
      %p235 = pneg %p50
      %p236 = pneg %p47
      %p237 = scmp.lt.s32.totalorder %s19, 1
      %s238 = scalar_select %p237, %s19, 1
      %p239 = scmp.lt.s32.totalorder %s20, 3
      %s240 = scalar_select %p239, %s20, 3
      %s241 = smul.addr %s238, 4
      %s242 = sadd.s32 %s240, %s241
      %s243 = sadd.s32 %s242, 8
      %s244 = smul.addr %s243, 4
      %s245 = scalar_lea.vmem %s1, %s244
      %p246 = pneg %p78
      %p247 = pneg %p75
      %p248 = scmp.lt.s32.totalorder %s19, 1
      %s249 = scalar_select %p248, %s19, 1
      %p250 = scmp.lt.s32.totalorder %s20, 3
      %s251 = scalar_select %p250, %s20, 3
      %s252 = smul.addr %s249, 4
      %s253 = sadd.s32 %s251, %s252
      %s254 = sadd.s32 %s253, 16
      %s255 = smul.addr %s254, 4
      %s256 = scalar_lea.vmem %s2, %s255
      %p257 = pneg %p106
      %p258 = pneg %p103
      %p259 = scmp.lt.s32.totalorder %s19, 1
      %s260 = scalar_select %p259, %s19, 1
      %s261 = scalar_lea.vmem %s3, %s260
      %p262 = pneg %p132
      %p263 = pneg %p129
      %p264 = pneg %p160
      %p265 = pneg %p157
      %p266 = scmp.lt.s32.totalorder %s19, 1
      %s267 = scalar_select %p266, %s19, 1
      %p268 = scmp.lt.s32.totalorder %s20, 3
      %s269 = scalar_select %p268, %s20, 3
      %s270 = smul.addr %s267, 4
      %s271 = sadd.s32 %s269, %s270
      %s272 = smul.addr %s271, 4
      %s273 = scalar_lea.vmem %s4, %s272
      %p274 = scmp.lt.s32.totalorder %s19, 1
      %s275 = scalar_select %p274, %s19, 1
      %p276 = scmp.lt.s32.totalorder %s20, 3
      %s277 = scalar_select %p276, %s20, 3
      %s278 = smul.addr %s275, 4
      %s279 = sadd.s32 %s277, %s278
      %s280 = smul.addr %s279, 4
      %s281 = scalar_lea.vmem %s0, %s280
      %p282 = scmp.lt.s32.totalorder %s19, 1
      %s283 = scalar_select %p282, %s19, 1
      %p284 = scmp.lt.s32.totalorder %s20, 3
      %s285 = scalar_select %p284, %s20, 3
      %s286 = smul.addr %s283, 4
      %s287 = sadd.s32 %s285, %s286
      %s288 = sadd.s32 %s287, 8
      %s289 = smul.addr %s288, 4
      %s290 = scalar_lea.vmem %s1, %s289
      %p291 = scmp.lt.s32.totalorder %s19, 1
      %s292 = scalar_select %p291, %s19, 1
      %p293 = scmp.lt.s32.totalorder %s20, 3
      %s294 = scalar_select %p293, %s20, 3
      %s295 = smul.addr %s292, 4
      %s296 = sadd.s32 %s294, %s295
      %s297 = sadd.s32 %s296, 16
      %s298 = smul.addr %s297, 4
      %s299 = scalar_lea.vmem %s2, %s298
      %p300 = scmp.lt.s32.totalorder %s19, 1
      %s301 = scalar_select %p300, %s19, 1
      %s302 = scalar_lea.vmem %s3, %s301
      %p303 = scmp.lt.s32.totalorder %s19, 1
      %s304 = scalar_select %p303, %s19, 1
      %p305 = scmp.lt.s32.totalorder %s20, 3
      %s306 = scalar_select %p305, %s20, 3
      %s307 = smul.addr %s304, 4
      %s308 = sadd.s32 %s306, %s307
      %s309 = smul.addr %s308, 4
      %s310 = scalar_lea.vmem %s4, %s309
      %v312 = vld [vmem:[%s281] sm:$0xf]
      %v313 = vld [vmem:[%s290] sm:$0xf]
      %v314 = vld [vmem:[%s299] sm:$0xf]
      %v315 = vld [vmem:[%s302] sm:$0x1]
      %v316 = vsub.f32 1.0, %v315
      %v317 = vmul.f32 %v316, -10000.0
      %vm318 = vcmask 64512
      %v320 = vsel %vm318, %v312, 0
      %v323 = vsel %vm318, %v313, 0
      %325 = vmatprep.subr.bf16.mxu0 0
      %326 = vmatpush1.bf16.xpose.msra.mxu0 0
      %327 = vmatprep.subr.bf16.mxu0 0
      %328 = vmatpush1.bf16.xpose.msra.mxu0 0
      %329 = vmatprep.subr.bf16.mxu0 0
      %330 = vmatpush1.bf16.xpose.msra.mxu0 0
      %331 = vmatprep.subr.bf16.mxu0 0
      %332 = vmatpush1.bf16.xpose.msra.mxu0 0
      %333 = vmatprep.subr.bf16.mxu0 0
      %334 = vmatpush1.bf16.xpose.msra.mxu0 0
      %335 = vmatprep.subr.bf16.mxu0 0
      %336 = vmatpush1.bf16.xpose.msra.mxu0 0
      %337 = vmatprep.subr.bf16.mxu0 0
      %338 = vmatpush1.bf16.xpose.msra.mxu0 0
      %339 = vmatprep.subr.bf16.mxu0 0
      %340 = vmatpush1.bf16.xpose.msra.mxu0 %v323
      %341 = vmatprep.subr.bf16.mxu0 0
      %342 = vmatpush2.bf16.xpose.msra.mxu0 0
      %343 = vmatprep.subr.bf16.mxu0 0
      %344 = vmatpush2.bf16.xpose.msra.mxu0 0
      %345 = vmatprep.subr.bf16.mxu0 0
      %346 = vmatpush2.bf16.xpose.msra.mxu0 0
      %347 = vmatprep.subr.bf16.mxu0 0
      %348 = vmatpush2.bf16.xpose.msra.mxu0 0
      %349 = vmatprep.subr.bf16.mxu0 0
      %350 = vmatpush2.bf16.xpose.msra.mxu0 0
      %351 = vmatprep.subr.bf16.mxu0 0
      %352 = vmatpush2.bf16.xpose.msra.mxu0 0
      %353 = vmatprep.subr.bf16.mxu0 0
      %354 = vmatpush2.bf16.xpose.msra.mxu0 0
      %355 = vmatprep.subr.bf16.mxu0 0
      %356 = vmatpush2.bf16.xpose.msra.mxu0 0
      %357 = vmatprep.mubr.bf16.mxu0 0
      %358 = vmatmul.mubr.bf16.gmra.mxu0 %v320
      %v359 = vpop.f32.mrf.mxu0
      %v360 = vadd.f32 0.0, %v359
      %v361 = vpop.f32.mrf.mxu0
      %v362 = vpop.f32.mrf.mxu0
      %v363 = vpop.f32.mrf.mxu0
      %364 = vdwg.mxu0
      %v365 = vmul.f32 %v360, 0.35355338
      %v367 = vlaneseq
      %v368 = vshrl.u32 %v367, 7
      %v369 = vsub.s32 0, %v368
      %v370 = vrot.slane %v317, %v369
      %v372 = vadd.f32 %v365, %v370
      %v373 = vsel %vm318, %v372, -inf
      %374 = vmax.xlane.f32.xlu0 %v373
      %v375 = vpop.xlane.xlu0 %374
      %v376 = vsub.f32 %v372, %v375
      %v377 = vmul.f32 %v376, 1.442695
      %v378 = vpow.pop %v377
      %v379 = vsel %vm318, %v378, 0.0
      %380 = vadd.xlane.f32.xlu0 %v379
      %v381 = vpop.xlane.xlu0 %380
      %v382 = vrcp.pop %v381
      %v383 = vmul.f32 %v378, %v382
      %v384 = vpack.c.bf16 %v383, %v383
      %v386 = vsel %vm318, %v384, 0
      %vm388 = vcmask 1043456
      %v390 = vsel %vm388, %v314, 0
      %392 = vmatprep.subr.bf16.mxu0 0
      %393 = vmatpush1.bf16.msra.mxu0 0
      %394 = vmatprep.subr.bf16.mxu0 0
      %395 = vmatpush1.bf16.msra.mxu0 0
      %396 = vmatprep.subr.bf16.mxu0 0
      %397 = vmatpush1.bf16.msra.mxu0 0
      %398 = vmatprep.subr.bf16.mxu0 0
      %399 = vmatpush1.bf16.msra.mxu0 0
      %400 = vmatprep.subr.bf16.mxu0 0
      %401 = vmatpush1.bf16.msra.mxu0 0
      %402 = vmatprep.subr.bf16.mxu0 0
      %403 = vmatpush1.bf16.msra.mxu0 0
      %404 = vmatprep.subr.bf16.mxu0 0
      %405 = vmatpush1.bf16.msra.mxu0 0
      %406 = vmatprep.subr.bf16.mxu0 0
      %407 = vmatpush1.bf16.msra.mxu0 %v390
      %408 = vmatprep.subr.bf16.mxu0 0
      %409 = vmatpush2.bf16.msra.mxu0 0
      %410 = vmatprep.subr.bf16.mxu0 0
      %411 = vmatpush2.bf16.msra.mxu0 0
      %412 = vmatprep.subr.bf16.mxu0 0
      %413 = vmatpush2.bf16.msra.mxu0 0
      %414 = vmatprep.subr.bf16.mxu0 0
      %415 = vmatpush2.bf16.msra.mxu0 0
      %416 = vmatprep.subr.bf16.mxu0 0
      %417 = vmatpush2.bf16.msra.mxu0 0
      %418 = vmatprep.subr.bf16.mxu0 0
      %419 = vmatpush2.bf16.msra.mxu0 0
      %420 = vmatprep.subr.bf16.mxu0 0
      %421 = vmatpush2.bf16.msra.mxu0 0
      %422 = vmatprep.subr.bf16.mxu0 0
      %423 = vmatpush2.bf16.msra.mxu0 0
      %424 = vmatprep.mubr.bf16.mxu0 0
      %425 = vmatmul.mubr.bf16.gmra.mxu0 %v386
      %v426 = vpop.f32.mrf.mxu0
      %v427 = vadd.f32 0.0, %v426
      %v428 = vpop.f32.mrf.mxu0
      %v429 = vpop.f32.mrf.mxu0
      %v430 = vpop.f32.mrf.mxu0
      %431 = vdwg.mxu0
      %v432 = vpack.c.bf16 %v427, %v427
      %vm433 = vcmask 60416
      %434 = vst.msk [vmem:[%s310] sm:$0xf] %vm433, %v432
      %p435 = scmp.lt.s32.totalorder %s19, 1
      %s436 = scalar_select %p435, %s19, 1
      %p437 = scmp.lt.s32.totalorder %s20, 3
      %s438 = scalar_select %p437, %s20, 3
      %s439 = smul.addr %s436, 4
      %s440 = sadd.s32 %s438, %s439
      %s441 = smul.addr %s440, 4
      %s442 = scalar_lea.vmem %s4, %s441
      // Predicated region
      $region37: #{groie_forward.19} parent=35 // pred_check
        %p443 = pneg %p157
      $region38: #{groie_forward.19} parent=35 // pred_check_branch
        %445 = sbr.rel (%p443) target = $region40
      $region39: #{groie_forward.19} parent=35 // pred_region
        _
      $region40: #{groie_forward.19} parent=35 // pred_fallthru
        _
    $region36: #{groie_forward.19} parent=5 // pred_fallthru
      _
    %p446 = scmp.le.s32.totalorder 2, %s10
    // Predicated region
    $region41: #{groie_forward.19} parent=5 // pred_check
      %p447 = pneg %p446
    $region42: #{groie_forward.19} parent=5 // pred_check_branch
      %449 = sbr.rel (%p447) target = $region44
    $region43: #{groie_forward.19} parent=5 // pred_region
      %s450 = ssub.s32 %s10, 2
      // Predicated region
      $region45: #{groie_forward.19} parent=43 // pred_check
        %p451 = pneg %p163
      $region46: #{groie_forward.19} parent=43 // pred_check_branch
        %453 = sbr.rel (%p451) target = $region48
      $region47: #{groie_forward.19} parent=43 // pred_region
        %p454 = scmp.lt.s32.totalorder %s21, 1
        %s455 = scalar_select %p454, %s21, 1
        %p456 = scmp.lt.s32.totalorder %s22, 3
        %s457 = scalar_select %p456, %s22, 3
        %s458 = smul.addr %s455, 4
        %s459 = sadd.s32 %s457, %s458
        %s460 = smul.addr %s459, 4
        %s461 = scalar_lea.vmem %s4, %s460
      $region48: #{groie_forward.19} parent=43 // pred_fallthru
        _
    $region44: #{groie_forward.19} parent=5 // pred_fallthru
      _
  $region6: #{groie_forward.19} parent=0 // loop_footer
    %s14 = sadd.s32 1, %s10
  $region7: #{groie_forward.19} parent=0 // loop_footer_branch
    %9 = sbr.rel target = $region3
  $region8: #{groie_forward.19} parent=0 // loop_exit
    _

// kernel: groie_forward.20
$region0: #{groie_forward.20}
  #allocation0 [shape = 'u32[]', space=smem, size = 0x4, offset = 0x4, fixed_abs, tag = 'smem constant byte address 0x4 - core index']
  #allocation1 [shape = 'u32[144,128]{1,0:T(1,128)}', space=vmem, size = 0x12000, scoped, tag = 'internal scratch']
  #allocation2 [shape = 'f32[16,32]{1,0:T(8,128)}', space=vmem, size = 0x2000, scoped, tag = 'scratch operand']
  %s0 = inlined_call_operand.vmem [shape: bf16[16,32], index: 0, kind: input, shape index: {}]
  %s1 = inlined_call_operand.vmem [shape: bf16[32,32], index: 1, kind: input, shape index: {}]
  %s2 = inlined_call_operand.vmem [shape: f32[1,32], index: 2, kind: input, shape index: {}]
  %s3 = inlined_call_operand.vmem [shape: bf16[16,32], index: 3, kind: input, shape index: {}]
  %s4 = inlined_call_operand.vmem [shape: f32[1,32], index: 4, kind: input, shape index: {}]
  %s5 = inlined_call_operand.vmem [shape: f32[1,32], index: 5, kind: input, shape index: {}]
  %s6 = inlined_call_operand.vmem [shape: bf16[16,32], index: 6, kind: output, shape index: {}]
  %s7 = sld [smem:[#allocation0]]
  $region42: #{groie_forward.20} parent=0
    _
  %s9 = ssub.s32 1, %s7
  %s10 = scalar_select 0, %s9, %s7
  // Predicated region
  $region2: #{groie_forward.20} parent=0 // pred_check
    _
  $region3: #{groie_forward.20} parent=0 // pred_check_branch
    %12 = sbr.rel (0) target = $region5
  $region4: #{groie_forward.20} parent=0 // pred_region
    _
  $region5: #{groie_forward.20} parent=0 // pred_fallthru
    _
  // Predicated region
  $region6: #{groie_forward.20} parent=0 // pred_check
    _
  $region7: #{groie_forward.20} parent=0 // pred_check_branch
    %14 = sbr.rel (0) target = $region9
  $region8: #{groie_forward.20} parent=0 // pred_region
    _
  $region9: #{groie_forward.20} parent=0 // pred_fallthru
    _
  // Predicated region
  $region10: #{groie_forward.20} parent=0 // pred_check
    _
  $region11: #{groie_forward.20} parent=0 // pred_check_branch
    %16 = sbr.rel (0) target = $region13
  $region12: #{groie_forward.20} parent=0 // pred_region
    _
  $region13: #{groie_forward.20} parent=0 // pred_fallthru
    _
  // Predicated region
  $region14: #{groie_forward.20} parent=0 // pred_check
    _
  $region15: #{groie_forward.20} parent=0 // pred_check_branch
    %18 = sbr.rel (0) target = $region17
  $region16: #{groie_forward.20} parent=0 // pred_region
    _
  $region17: #{groie_forward.20} parent=0 // pred_fallthru
    _
  // Predicated region
  $region18: #{groie_forward.20} parent=0 // pred_check
    _
  $region19: #{groie_forward.20} parent=0 // pred_check_branch
    %20 = sbr.rel (0) target = $region21
  $region20: #{groie_forward.20} parent=0 // pred_region
    _
  $region21: #{groie_forward.20} parent=0 // pred_fallthru
    _
  // Predicated region
  $region22: #{groie_forward.20} parent=0 // pred_check
    _
  $region23: #{groie_forward.20} parent=0 // pred_check_branch
    %22 = sbr.rel (0) target = $region25
  $region24: #{groie_forward.20} parent=0 // pred_region
    _
  $region25: #{groie_forward.20} parent=0 // pred_fallthru
    _
  %p24 = scmp.eq.s32.totalorder 0, 0
  // Predicated region
  $region26: #{groie_forward.20} parent=0 // pred_check
    %p25 = pneg %p24
  $region27: #{groie_forward.20} parent=0 // pred_check_branch
    %27 = sbr.rel (%p25) target = $region29
  $region28: #{groie_forward.20} parent=0 // pred_region
    %vm28 = vcmask 261120
    %29 = vst.msk [vmem:[#allocation2] sm:$0xff] %vm28, 0.0
    %30 = vst.msk [vmem:[#allocation2 + $0x8] sm:$0xff] %vm28, 0.0
  $region29: #{groie_forward.20} parent=0 // pred_fallthru
    _
  %v31 = vld [vmem:[#allocation2] sm:$0xff]
  %v32 = vld [vmem:[#allocation2 + $0x8] sm:$0xff]
  %v33 = vld [vmem:[%s0] sm:$0xf]
  %v34 = vld [vmem:[%s0 + $0x4] sm:$0xf]
  %v35 = vld [vmem:[%s1] sm:$0xf]
  %v36 = vld [vmem:[%s1 + $0x4] sm:$0xf]
  %v37 = vld [vmem:[%s1 + $0x8] sm:$0xf]
  %v38 = vld [vmem:[%s1 + $0xc] sm:$0xf]
  %v41 = vunpack.c.l.b16 %v33
  %v42 = vunpack.c.l.b16 %v34
  %v43 = vpack.c.b16 %v42, %v41
  %v48 = vunpack.c.l.b16 %v35
  %v49 = vunpack.c.l.b16 %v36
  %v50 = vunpack.c.l.b16 %v37
  %v51 = vunpack.c.l.b16 %v38
  %v52 = vpack.c.b16 %v49, %v48
  %v53 = vpack.c.b16 %v51, %v50
  %vm56 = vcmask 261120
  %v58 = vsel %vm56, %v43, 0
  %60 = vmatprep.subr.bf16.mxu0 0
  %61 = vmatpush1.bf16.msra.mxu0 0
  %62 = vmatprep.subr.bf16.mxu0 0
  %63 = vmatpush1.bf16.msra.mxu0 0
  %64 = vmatprep.subr.bf16.mxu0 0
  %65 = vmatpush1.bf16.msra.mxu0 0
  %66 = vmatprep.subr.bf16.mxu0 0
  %67 = vmatpush1.bf16.msra.mxu0 0
  %68 = vmatprep.subr.bf16.mxu0 0
  %69 = vmatpush1.bf16.msra.mxu0 0
  %70 = vmatprep.subr.bf16.mxu0 0
  %71 = vmatpush1.bf16.msra.mxu0 0
  %72 = vmatprep.subr.bf16.mxu0 0
  %73 = vmatpush1.bf16.msra.mxu0 %v53
  %74 = vmatprep.subr.bf16.mxu0 0
  %75 = vmatpush1.bf16.msra.mxu0 %v52
  %76 = vmatprep.subr.bf16.mxu0 0
  %77 = vmatpush2.bf16.msra.mxu0 0
  %78 = vmatprep.subr.bf16.mxu0 0
  %79 = vmatpush2.bf16.msra.mxu0 0
  %80 = vmatprep.subr.bf16.mxu0 0
  %81 = vmatpush2.bf16.msra.mxu0 0
  %82 = vmatprep.subr.bf16.mxu0 0
  %83 = vmatpush2.bf16.msra.mxu0 0
  %84 = vmatprep.subr.bf16.mxu0 0
  %85 = vmatpush2.bf16.msra.mxu0 0
  %86 = vmatprep.subr.bf16.mxu0 0
  %87 = vmatpush2.bf16.msra.mxu0 0
  %88 = vmatprep.subr.bf16.mxu0 0
  %89 = vmatpush2.bf16.msra.mxu0 0
  %90 = vmatprep.subr.bf16.mxu0 0
  %91 = vmatpush2.bf16.msra.mxu0 0
  %92 = vmatprep.mubr.bf16.mxu0 0
  %93 = vmatmul.mubr.bf16.gmra.mxu0 %v58
  %v94 = vpop.f32.mrf.mxu0
  %v95 = vadd.f32 0.0, %v94
  %v96 = vpop.f32.mrf.mxu0
  %v97 = vpop.f32.mrf.mxu0
  %v98 = vadd.f32 0.0, %v97
  %v99 = vpop.f32.mrf.mxu0
  %100 = vdwg.mxu0
  %v101 = vadd.f32 %v31, %v95
  %v102 = vadd.f32 %v32, %v98
  %103 = vst.msk [vmem:[#allocation2] sm:$0xff] %vm56, %v101
  %104 = vst.msk [vmem:[#allocation2 + $0x8] sm:$0xff] %vm56, %v102
  // Predicated region
  $region30: #{groie_forward.20} parent=0 // pred_check
    %p105 = pneg %p24
  $region31: #{groie_forward.20} parent=0 // pred_check_branch
    %107 = sbr.rel (%p105) target = $region33
  $region32: #{groie_forward.20} parent=0 // pred_region
    %v108 = vld [vmem:[#allocation2] sm:$0xff]
    %v109 = vld [vmem:[#allocation2 + $0x8] sm:$0xff]
    %v110 = vld [vmem:[%s2] sm:$0x1]
    %v112 = vlaneseq
    %v113 = vshrl.u32 %v112, 7
    %v114 = vsub.s32 0, %v113
    %v115 = vrot.slane %v110, %v114
    %v117 = vadd.f32 %v108, %v115
    %v118 = vadd.f32 %v109, %v115
    %v119 = vld [vmem:[%s3] sm:$0xf]
    %v120 = vld [vmem:[%s3 + $0x4] sm:$0xf]
    %v121 = vunpack.c.l.bf16 %v119
    %v122 = vunpack.c.l.bf16 %v120
    %v123 = vadd.f32 %v117, %v121
    %v124 = vadd.f32 %v118, %v122
    %v125 = vld [vmem:[%s4] sm:$0x1]
    %v126 = vld [vmem:[%s5] sm:$0x1]
    %v127 = vsel %vm56, %v123, 0.0
    %128 = vadd.xlane.f32.xlu0 %v127
    %v129 = vpop.xlane.xlu0 %128
    %v130 = vsel %vm56, %v124, 0.0
    %131 = vadd.xlane.f32.xlu0 %v130
    %v132 = vpop.xlane.xlu0 %131
    %v133 = vrcp.pop 32.0
    %v134 = vmul.f32 %v129, %v133
    %v135 = vmul.f32 %v132, %v133
    %v136 = vsub.f32 %v123, %v134
    %v137 = vsub.f32 %v124, %v135
    %v138 = vmul.f32 %v136, %v136
    %v139 = vmul.f32 %v137, %v137
    %v140 = vsel %vm56, %v138, 0.0
    %141 = vadd.xlane.f32.xlu0 %v140
    %v142 = vpop.xlane.xlu0 %141
    %v143 = vsel %vm56, %v139, 0.0
    %144 = vadd.xlane.f32.xlu0 %v143
    %v145 = vpop.xlane.xlu0 %144
    %v146 = vmul.f32 %v142, %v133
    %v147 = vmul.f32 %v145, %v133
    %v148 = vadd.f32 %v146, 1e-12
    %v149 = vadd.f32 %v147, 1e-12
    %v150 = vrsqrt.pop %v148
    %v151 = vrsqrt.pop %v149
    %v152 = vmul.f32 %v136, %v150
    %v153 = vmul.f32 %v137, %v151
    %v155 = vlaneseq
    %v156 = vshrl.u32 %v155, 7
    %v157 = vsub.s32 0, %v156
    %v158 = vrot.slane %v125, %v157
    %v160 = vmul.f32 %v152, %v158
    %v161 = vmul.f32 %v153, %v158
    %v163 = vlaneseq
    %v164 = vshrl.u32 %v163, 7
    %v165 = vsub.s32 0, %v164
    %v166 = vrot.slane %v126, %v165
    %v168 = vadd.f32 %v160, %v166
    %v169 = vadd.f32 %v161, %v166
    %v170 = vpack.c.bf16 %v169, %v168
    %v172 = vunpack.c.l.b16 %v170
    %v173 = vunpack.c.h.b16 %v170
    %v174 = vpack.c.b16 %v172, %v172
    %v175 = vpack.c.b16 %v173, %v173
    %vm178 = vcmask 257024
    %179 = vst.msk [vmem:[%s6] sm:$0xf] %vm178, %v174
    %180 = vst.msk [vmem:[%s6 + $0x4] sm:$0xf] %vm178, %v175
  $region33: #{groie_forward.20} parent=0 // pred_fallthru
    _
  // Predicated region
  $region34: #{groie_forward.20} parent=0 // pred_check
    _
  $region35: #{groie_forward.20} parent=0 // pred_check_branch
    %182 = sbr.rel (0) target = $region37
  $region36: #{groie_forward.20} parent=0 // pred_region
    _
  $region37: #{groie_forward.20} parent=0 // pred_fallthru
    _
  // Predicated region
  $region38: #{groie_forward.20} parent=0 // pred_check
    _
  $region39: #{groie_forward.20} parent=0 // pred_check_branch
    %184 = sbr.rel (0) target = $region41
  $region40: #{groie_forward.20} parent=0 // pred_region
    _
  $region41: #{groie_forward.20} parent=0 // pred_fallthru
    _

// kernel: groie_forward.21
$region0: #{groie_forward.21}
  #allocation0 [shape = 'u32[]', space=smem, size = 0x4, offset = 0x4, fixed_abs, tag = 'smem constant byte address 0x4 - core index']
  #allocation1 [shape = 'u32[144,128]{1,0:T(1,128)}', space=vmem, size = 0x12000, scoped, tag = 'internal scratch']
  #allocation2 [shape = 'f32[16,64]{1,0:T(8,128)}', space=vmem, size = 0x2000, scoped, tag = 'scratch operand']
  %s0 = inlined_call_operand.vmem [shape: bf16[16,32], index: 0, kind: input, shape index: {}]
  %s1 = inlined_call_operand.vmem [shape: bf16[32,64], index: 1, kind: input, shape index: {}]
  %s2 = inlined_call_operand.vmem [shape: f32[1,64], index: 2, kind: input, shape index: {}]
  %s3 = inlined_call_operand.vmem [shape: bf16[16,64], index: 3, kind: output, shape index: {}]
  %s4 = sld [smem:[#allocation0]]
  $region30: #{groie_forward.21} parent=0
    _
  %s6 = ssub.s32 1, %s4
  %s7 = scalar_select 0, %s6, %s4
  // Predicated region
  $region2: #{groie_forward.21} parent=0 // pred_check
    _
  $region3: #{groie_forward.21} parent=0 // pred_check_branch
    %9 = sbr.rel (0) target = $region5
  $region4: #{groie_forward.21} parent=0 // pred_region
    _
  $region5: #{groie_forward.21} parent=0 // pred_fallthru
    _
  // Predicated region
  $region6: #{groie_forward.21} parent=0 // pred_check
    _
  $region7: #{groie_forward.21} parent=0 // pred_check_branch
    %11 = sbr.rel (0) target = $region9
  $region8: #{groie_forward.21} parent=0 // pred_region
    _
  $region9: #{groie_forward.21} parent=0 // pred_fallthru
    _
  // Predicated region
  $region10: #{groie_forward.21} parent=0 // pred_check
    _
  $region11: #{groie_forward.21} parent=0 // pred_check_branch
    %13 = sbr.rel (0) target = $region13
  $region12: #{groie_forward.21} parent=0 // pred_region
    _
  $region13: #{groie_forward.21} parent=0 // pred_fallthru
    _
  %p15 = scmp.eq.s32.totalorder 0, 0
  // Predicated region
  $region14: #{groie_forward.21} parent=0 // pred_check
    %p16 = pneg %p15
  $region15: #{groie_forward.21} parent=0 // pred_check_branch
    %18 = sbr.rel (%p16) target = $region17
  $region16: #{groie_forward.21} parent=0 // pred_region
    %vm19 = vcmask 523264
    %20 = vst.msk [vmem:[#allocation2] sm:$0xff] %vm19, 0.0
    %21 = vst.msk [vmem:[#allocation2 + $0x8] sm:$0xff] %vm19, 0.0
  $region17: #{groie_forward.21} parent=0 // pred_fallthru
    _
  %v22 = vld [vmem:[#allocation2] sm:$0xff]
  %v23 = vld [vmem:[#allocation2 + $0x8] sm:$0xff]
  %v24 = vld [vmem:[%s0] sm:$0xf]
  %v25 = vld [vmem:[%s0 + $0x4] sm:$0xf]
  %v26 = vld [vmem:[%s1] sm:$0xf]
  %v27 = vld [vmem:[%s1 + $0x4] sm:$0xf]
  %v28 = vld [vmem:[%s1 + $0x8] sm:$0xf]
  %v29 = vld [vmem:[%s1 + $0xc] sm:$0xf]
  %v32 = vunpack.c.l.b16 %v24
  %v33 = vunpack.c.l.b16 %v25
  %v34 = vpack.c.b16 %v33, %v32
  %v39 = vunpack.c.l.b16 %v26
  %v40 = vunpack.c.l.b16 %v27
  %v41 = vunpack.c.l.b16 %v28
  %v42 = vunpack.c.l.b16 %v29
  %v43 = vpack.c.b16 %v40, %v39
  %v44 = vpack.c.b16 %v42, %v41
  %vm47 = vcmask 261120
  %v49 = vsel %vm47, %v34, 0
  %51 = vmatprep.subr.bf16.mxu0 0
  %52 = vmatpush1.bf16.msra.mxu0 0
  %53 = vmatprep.subr.bf16.mxu0 0
  %54 = vmatpush1.bf16.msra.mxu0 0
  %55 = vmatprep.subr.bf16.mxu0 0
  %56 = vmatpush1.bf16.msra.mxu0 0
  %57 = vmatprep.subr.bf16.mxu0 0
  %58 = vmatpush1.bf16.msra.mxu0 0
  %59 = vmatprep.subr.bf16.mxu0 0
  %60 = vmatpush1.bf16.msra.mxu0 0
  %61 = vmatprep.subr.bf16.mxu0 0
  %62 = vmatpush1.bf16.msra.mxu0 0
  %63 = vmatprep.subr.bf16.mxu0 0
  %64 = vmatpush1.bf16.msra.mxu0 %v44
  %65 = vmatprep.subr.bf16.mxu0 0
  %66 = vmatpush1.bf16.msra.mxu0 %v43
  %67 = vmatprep.subr.bf16.mxu0 0
  %68 = vmatpush2.bf16.msra.mxu0 0
  %69 = vmatprep.subr.bf16.mxu0 0
  %70 = vmatpush2.bf16.msra.mxu0 0
  %71 = vmatprep.subr.bf16.mxu0 0
  %72 = vmatpush2.bf16.msra.mxu0 0
  %73 = vmatprep.subr.bf16.mxu0 0
  %74 = vmatpush2.bf16.msra.mxu0 0
  %75 = vmatprep.subr.bf16.mxu0 0
  %76 = vmatpush2.bf16.msra.mxu0 0
  %77 = vmatprep.subr.bf16.mxu0 0
  %78 = vmatpush2.bf16.msra.mxu0 0
  %79 = vmatprep.subr.bf16.mxu0 0
  %80 = vmatpush2.bf16.msra.mxu0 0
  %81 = vmatprep.subr.bf16.mxu0 0
  %82 = vmatpush2.bf16.msra.mxu0 0
  %83 = vmatprep.mubr.bf16.mxu0 0
  %84 = vmatmul.mubr.bf16.gmra.mxu0 %v49
  %v85 = vpop.f32.mrf.mxu0
  %v86 = vadd.f32 0.0, %v85
  %v87 = vpop.f32.mrf.mxu0
  %v88 = vpop.f32.mrf.mxu0
  %v89 = vadd.f32 0.0, %v88
  %v90 = vpop.f32.mrf.mxu0
  %91 = vdwg.mxu0
  %v92 = vadd.f32 %v22, %v86
  %v93 = vadd.f32 %v23, %v89
  %vm94 = vcmask 523264
  %95 = vst.msk [vmem:[#allocation2] sm:$0xff] %vm94, %v92
  %96 = vst.msk [vmem:[#allocation2 + $0x8] sm:$0xff] %vm94, %v93
  // Predicated region
  $region18: #{groie_forward.21} parent=0 // pred_check
    %p97 = pneg %p15
  $region19: #{groie_forward.21} parent=0 // pred_check_branch
    %99 = sbr.rel (%p97) target = $region21
  $region20: #{groie_forward.21} parent=0 // pred_region
    %v100 = vld [vmem:[#allocation2] sm:$0xff]
    %v101 = vld [vmem:[#allocation2 + $0x8] sm:$0xff]
    %v102 = vld [vmem:[%s2] sm:$0x1]
    %v104 = vlaneseq
    %v105 = vshrl.u32 %v104, 7
    %v106 = vsub.s32 0, %v105
    %v107 = vrot.slane %v102, %v106
    %v109 = vadd.f32 %v100, %v107
    %v110 = vadd.f32 %v101, %v107
    %v111 = vmul.f32 %v109, 0.5
    %v112 = vmul.f32 %v110, 0.5
    %v113 = vmul.f32 %v109, 0.044715
    %v114 = vmul.f32 %v110, 0.044715
    %v115 = vmul.f32 %v113, %v109
    %v116 = vmul.f32 %v114, %v110
    %v117 = vmul.f32 %v115, %v109
    %v118 = vmul.f32 %v116, %v110
    %v119 = vadd.f32 %v109, %v117
    %v120 = vadd.f32 %v110, %v118
    %v121 = vmul.f32 %v119, 0.7978846
    %v122 = vmul.f32 %v120, 0.7978846
    %v123 = vtanh.pop %v121
    %v124 = vtanh.pop %v122
    %v125 = vadd.f32 %v123, 1.0
    %v126 = vadd.f32 %v124, 1.0
    %v127 = vmul.f32 %v111, %v125
    %v128 = vmul.f32 %v112, %v126
    %v129 = vpack.c.bf16 %v128, %v127
    %v131 = vunpack.c.l.b16 %v129
    %v132 = vunpack.c.h.b16 %v129
    %v133 = vpack.c.b16 %v131, %v131
    %v134 = vpack.c.b16 %v132, %v132
    %vm137 = vcmask 519168
    %138 = vst.msk [vmem:[%s3] sm:$0xf] %vm137, %v133
    %139 = vst.msk [vmem:[%s3 + $0x4] sm:$0xf] %vm137, %v134
  $region21: #{groie_forward.21} parent=0 // pred_fallthru
    _
  // Predicated region
  $region22: #{groie_forward.21} parent=0 // pred_check
    _
  $region23: #{groie_forward.21} parent=0 // pred_check_branch
    %141 = sbr.rel (0) target = $region25
  $region24: #{groie_forward.21} parent=0 // pred_region
    _
  $region25: #{groie_forward.21} parent=0 // pred_fallthru
    _
  // Predicated region
  $region26: #{groie_forward.21} parent=0 // pred_check
    _
  $region27: #{groie_forward.21} parent=0 // pred_check_branch
    %143 = sbr.rel (0) target = $region29
  $region28: #{groie_forward.21} parent=0 // pred_region
    _
  $region29: #{groie_forward.21} parent=0 // pred_fallthru
    _

// kernel: groie_forward.22
$region0: #{groie_forward.22}
  #allocation0 [shape = 'u32[]', space=smem, size = 0x4, offset = 0x4, fixed_abs, tag = 'smem constant byte address 0x4 - core index']
  #allocation1 [shape = 'u32[144,128]{1,0:T(1,128)}', space=vmem, size = 0x12000, scoped, tag = 'internal scratch']
  #allocation2 [shape = 'f32[16,32]{1,0:T(8,128)}', space=vmem, size = 0x2000, scoped, tag = 'scratch operand']
  %s0 = inlined_call_operand.vmem [shape: bf16[16,64], index: 0, kind: input, shape index: {}]
  %s1 = inlined_call_operand.vmem [shape: bf16[64,32], index: 1, kind: input, shape index: {}]
  %s2 = inlined_call_operand.vmem [shape: f32[1,32], index: 2, kind: input, shape index: {}]
  %s3 = inlined_call_operand.vmem [shape: bf16[16,32], index: 3, kind: input, shape index: {}]
  %s4 = inlined_call_operand.vmem [shape: f32[1,32], index: 4, kind: input, shape index: {}]
  %s5 = inlined_call_operand.vmem [shape: f32[1,32], index: 5, kind: input, shape index: {}]
  %s6 = inlined_call_operand.vmem [shape: bf16[32,128], index: 6, kind: input, shape index: {}]
  %s7 = inlined_call_operand.vmem [shape: f32[1,128], index: 7, kind: input, shape index: {}]
  %s8 = inlined_call_operand.vmem [shape: f32[16,128], index: 8, kind: output, shape index: {}]
  %s9 = sld [smem:[#allocation0]]
  $region50: #{groie_forward.22} parent=0
    _
  %s11 = ssub.s32 1, %s9
  %s12 = scalar_select 0, %s11, %s9
  // Predicated region
  $region2: #{groie_forward.22} parent=0 // pred_check
    _
  $region3: #{groie_forward.22} parent=0 // pred_check_branch
    %14 = sbr.rel (0) target = $region5
  $region4: #{groie_forward.22} parent=0 // pred_region
    _
  $region5: #{groie_forward.22} parent=0 // pred_fallthru
    _
  // Predicated region
  $region6: #{groie_forward.22} parent=0 // pred_check
    _
  $region7: #{groie_forward.22} parent=0 // pred_check_branch
    %16 = sbr.rel (0) target = $region9
  $region8: #{groie_forward.22} parent=0 // pred_region
    _
  $region9: #{groie_forward.22} parent=0 // pred_fallthru
    _
  // Predicated region
  $region10: #{groie_forward.22} parent=0 // pred_check
    _
  $region11: #{groie_forward.22} parent=0 // pred_check_branch
    %18 = sbr.rel (0) target = $region13
  $region12: #{groie_forward.22} parent=0 // pred_region
    _
  $region13: #{groie_forward.22} parent=0 // pred_fallthru
    _
  // Predicated region
  $region14: #{groie_forward.22} parent=0 // pred_check
    _
  $region15: #{groie_forward.22} parent=0 // pred_check_branch
    %20 = sbr.rel (0) target = $region17
  $region16: #{groie_forward.22} parent=0 // pred_region
    _
  $region17: #{groie_forward.22} parent=0 // pred_fallthru
    _
  // Predicated region
  $region18: #{groie_forward.22} parent=0 // pred_check
    _
  $region19: #{groie_forward.22} parent=0 // pred_check_branch
    %22 = sbr.rel (0) target = $region21
  $region20: #{groie_forward.22} parent=0 // pred_region
    _
  $region21: #{groie_forward.22} parent=0 // pred_fallthru
    _
  // Predicated region
  $region22: #{groie_forward.22} parent=0 // pred_check
    _
  $region23: #{groie_forward.22} parent=0 // pred_check_branch
    %24 = sbr.rel (0) target = $region25
  $region24: #{groie_forward.22} parent=0 // pred_region
    _
  $region25: #{groie_forward.22} parent=0 // pred_fallthru
    _
  // Predicated region
  $region26: #{groie_forward.22} parent=0 // pred_check
    _
  $region27: #{groie_forward.22} parent=0 // pred_check_branch
    %26 = sbr.rel (0) target = $region29
  $region28: #{groie_forward.22} parent=0 // pred_region
    _
  $region29: #{groie_forward.22} parent=0 // pred_fallthru
    _
  // Predicated region
  $region30: #{groie_forward.22} parent=0 // pred_check
    _
  $region31: #{groie_forward.22} parent=0 // pred_check_branch
    %28 = sbr.rel (0) target = $region33
  $region32: #{groie_forward.22} parent=0 // pred_region
    _
  $region33: #{groie_forward.22} parent=0 // pred_fallthru
    _
  %p30 = scmp.eq.s32.totalorder 0, 0
  // Predicated region
  $region34: #{groie_forward.22} parent=0 // pred_check
    %p31 = pneg %p30
  $region35: #{groie_forward.22} parent=0 // pred_check_branch
    %33 = sbr.rel (%p31) target = $region37
  $region36: #{groie_forward.22} parent=0 // pred_region
    %vm34 = vcmask 261120
    %35 = vst.msk [vmem:[#allocation2] sm:$0xff] %vm34, 0.0
    %36 = vst.msk [vmem:[#allocation2 + $0x8] sm:$0xff] %vm34, 0.0
  $region37: #{groie_forward.22} parent=0 // pred_fallthru
    _
  %v37 = vld [vmem:[#allocation2] sm:$0xff]
  %v38 = vld [vmem:[#allocation2 + $0x8] sm:$0xff]
  %v39 = vld [vmem:[%s0] sm:$0xf]
  %v40 = vld [vmem:[%s0 + $0x4] sm:$0xf]
  %v41 = vld [vmem:[%s1] sm:$0xf]
  %v42 = vld [vmem:[%s1 + $0x4] sm:$0xf]
  %v43 = vld [vmem:[%s1 + $0x8] sm:$0xf]
  %v44 = vld [vmem:[%s1 + $0xc] sm:$0xf]
  %v45 = vld [vmem:[%s1 + $0x10] sm:$0xf]
  %v46 = vld [vmem:[%s1 + $0x14] sm:$0xf]
  %v47 = vld [vmem:[%s1 + $0x18] sm:$0xf]
  %v48 = vld [vmem:[%s1 + $0x1c] sm:$0xf]
  %v51 = vunpack.c.l.b16 %v39
  %v52 = vunpack.c.l.b16 %v40
  %v53 = vpack.c.b16 %v52, %v51
  %v62 = vunpack.c.l.b16 %v41
  %v63 = vunpack.c.l.b16 %v42
  %v64 = vunpack.c.l.b16 %v43
  %v65 = vunpack.c.l.b16 %v44
  %v66 = vunpack.c.l.b16 %v45
  %v67 = vunpack.c.l.b16 %v46
  %v68 = vunpack.c.l.b16 %v47
  %v69 = vunpack.c.l.b16 %v48
  %v70 = vpack.c.b16 %v63, %v62
  %v71 = vpack.c.b16 %v65, %v64
  %v72 = vpack.c.b16 %v67, %v66
  %v73 = vpack.c.b16 %v69, %v68
  %vm78 = vcmask 523264
  %v80 = vsel %vm78, %v53, 0
  %82 = vmatprep.subr.bf16.mxu0 0
  %83 = vmatpush1.bf16.msra.mxu0 0
  %84 = vmatprep.subr.bf16.mxu0 0
  %85 = vmatpush1.bf16.msra.mxu0 0
  %86 = vmatprep.subr.bf16.mxu0 0
  %87 = vmatpush1.bf16.msra.mxu0 0
  %88 = vmatprep.subr.bf16.mxu0 0
  %89 = vmatpush1.bf16.msra.mxu0 0
  %90 = vmatprep.subr.bf16.mxu0 0
  %91 = vmatpush1.bf16.msra.mxu0 %v73
  %92 = vmatprep.subr.bf16.mxu0 0
  %93 = vmatpush1.bf16.msra.mxu0 %v72
  %94 = vmatprep.subr.bf16.mxu0 0
  %95 = vmatpush1.bf16.msra.mxu0 %v71
  %96 = vmatprep.subr.bf16.mxu0 0
  %97 = vmatpush1.bf16.msra.mxu0 %v70
  %98 = vmatprep.subr.bf16.mxu0 0
  %99 = vmatpush2.bf16.msra.mxu0 0
  %100 = vmatprep.subr.bf16.mxu0 0
  %101 = vmatpush2.bf16.msra.mxu0 0
  %102 = vmatprep.subr.bf16.mxu0 0
  %103 = vmatpush2.bf16.msra.mxu0 0
  %104 = vmatprep.subr.bf16.mxu0 0
  %105 = vmatpush2.bf16.msra.mxu0 0
  %106 = vmatprep.subr.bf16.mxu0 0
  %107 = vmatpush2.bf16.msra.mxu0 0
  %108 = vmatprep.subr.bf16.mxu0 0
  %109 = vmatpush2.bf16.msra.mxu0 0
  %110 = vmatprep.subr.bf16.mxu0 0
  %111 = vmatpush2.bf16.msra.mxu0 0
  %112 = vmatprep.subr.bf16.mxu0 0
  %113 = vmatpush2.bf16.msra.mxu0 0
  %114 = vmatprep.mubr.bf16.mxu0 0
  %115 = vmatmul.mubr.bf16.gmra.mxu0 %v80
  %v116 = vpop.f32.mrf.mxu0
  %v117 = vadd.f32 0.0, %v116
  %v118 = vpop.f32.mrf.mxu0
  %v119 = vpop.f32.mrf.mxu0
  %v120 = vadd.f32 0.0, %v119
  %v121 = vpop.f32.mrf.mxu0
  %122 = vdwg.mxu0
  %v123 = vadd.f32 %v37, %v117
  %v124 = vadd.f32 %v38, %v120
  %vm125 = vcmask 261120
  %126 = vst.msk [vmem:[#allocation2] sm:$0xff] %vm125, %v123
  %127 = vst.msk [vmem:[#allocation2 + $0x8] sm:$0xff] %vm125, %v124
  // Predicated region
  $region38: #{groie_forward.22} parent=0 // pred_check
    %p128 = pneg %p30
  $region39: #{groie_forward.22} parent=0 // pred_check_branch
    %130 = sbr.rel (%p128) target = $region41
  $region40: #{groie_forward.22} parent=0 // pred_region
    %v131 = vld [vmem:[#allocation2] sm:$0xff]
    %v132 = vld [vmem:[#allocation2 + $0x8] sm:$0xff]
    %v133 = vld [vmem:[%s2] sm:$0x1]
    %v135 = vlaneseq
    %v136 = vshrl.u32 %v135, 7
    %v137 = vsub.s32 0, %v136
    %v138 = vrot.slane %v133, %v137
    %v140 = vadd.f32 %v131, %v138
    %v141 = vadd.f32 %v132, %v138
    %v142 = vld [vmem:[%s3] sm:$0xf]
    %v143 = vld [vmem:[%s3 + $0x4] sm:$0xf]
    %v144 = vunpack.c.l.bf16 %v142
    %v145 = vunpack.c.l.bf16 %v143
    %v146 = vadd.f32 %v140, %v144
    %v147 = vadd.f32 %v141, %v145
    %v148 = vld [vmem:[%s4] sm:$0x1]
    %v149 = vld [vmem:[%s5] sm:$0x1]
    %v150 = vsel %vm125, %v146, 0.0
    %151 = vadd.xlane.f32.xlu0 %v150
    %v152 = vpop.xlane.xlu0 %151
    %v153 = vsel %vm125, %v147, 0.0
    %154 = vadd.xlane.f32.xlu0 %v153
    %v155 = vpop.xlane.xlu0 %154
    %v156 = vrcp.pop 32.0
    %v157 = vmul.f32 %v152, %v156
    %v158 = vmul.f32 %v155, %v156
    %v159 = vsub.f32 %v146, %v157
    %v160 = vsub.f32 %v147, %v158
    %v161 = vmul.f32 %v159, %v159
    %v162 = vmul.f32 %v160, %v160
    %v163 = vsel %vm125, %v161, 0.0
    %164 = vadd.xlane.f32.xlu0 %v163
    %v165 = vpop.xlane.xlu0 %164
    %v166 = vsel %vm125, %v162, 0.0
    %167 = vadd.xlane.f32.xlu0 %v166
    %v168 = vpop.xlane.xlu0 %167
    %v169 = vmul.f32 %v165, %v156
    %v170 = vmul.f32 %v168, %v156
    %v171 = vadd.f32 %v169, 1e-12
    %v172 = vadd.f32 %v170, 1e-12
    %v173 = vrsqrt.pop %v171
    %v174 = vrsqrt.pop %v172
    %v175 = vmul.f32 %v159, %v173
    %v176 = vmul.f32 %v160, %v174
    %v178 = vlaneseq
    %v179 = vshrl.u32 %v178, 7
    %v180 = vsub.s32 0, %v179
    %v181 = vrot.slane %v148, %v180
    %v183 = vmul.f32 %v175, %v181
    %v184 = vmul.f32 %v176, %v181
    %v186 = vlaneseq
    %v187 = vshrl.u32 %v186, 7
    %v188 = vsub.s32 0, %v187
    %v189 = vrot.slane %v149, %v188
    %v191 = vadd.f32 %v183, %v189
    %v192 = vadd.f32 %v184, %v189
    %v193 = vpack.c.bf16 %v192, %v191
    %v194 = vld [vmem:[%s6] sm:$0xf]
    %v195 = vld [vmem:[%s6 + $0x4] sm:$0xf]
    %v196 = vld [vmem:[%s6 + $0x8] sm:$0xf]
    %v197 = vld [vmem:[%s6 + $0xc] sm:$0xf]
    %v198 = vld [vmem:[%s7] sm:$0x1]
    %v200 = vlaneseq
    %v201 = vshrl.u32 %v200, 7
    %v202 = vsub.s32 0, %v201
    %v203 = vrot.slane %v198, %v202
    %v209 = vunpack.c.l.b16 %v194
    %v210 = vunpack.c.l.b16 %v195
    %v211 = vunpack.c.l.b16 %v196
    %v212 = vunpack.c.l.b16 %v197
    %v213 = vpack.c.b16 %v210, %v209
    %v214 = vpack.c.b16 %v212, %v211
    %v218 = vsel %vm125, %v193, 0
    %220 = vmatprep.subr.bf16.mxu0 0
    %221 = vmatpush1.bf16.msra.mxu0 0
    %222 = vmatprep.subr.bf16.mxu0 0
    %223 = vmatpush1.bf16.msra.mxu0 0
    %224 = vmatprep.subr.bf16.mxu0 0
    %225 = vmatpush1.bf16.msra.mxu0 0
    %226 = vmatprep.subr.bf16.mxu0 0
    %227 = vmatpush1.bf16.msra.mxu0 0
    %228 = vmatprep.subr.bf16.mxu0 0
    %229 = vmatpush1.bf16.msra.mxu0 0
    %230 = vmatprep.subr.bf16.mxu0 0
    %231 = vmatpush1.bf16.msra.mxu0 0
    %232 = vmatprep.subr.bf16.mxu0 0
    %233 = vmatpush1.bf16.msra.mxu0 %v214
    %234 = vmatprep.subr.bf16.mxu0 0
    %235 = vmatpush1.bf16.msra.mxu0 %v213
    %236 = vmatprep.subr.bf16.mxu0 0
    %237 = vmatpush2.bf16.msra.mxu0 0
    %238 = vmatprep.subr.bf16.mxu0 0
    %239 = vmatpush2.bf16.msra.mxu0 0
    %240 = vmatprep.subr.bf16.mxu0 0
    %241 = vmatpush2.bf16.msra.mxu0 0
    %242 = vmatprep.subr.bf16.mxu0 0
    %243 = vmatpush2.bf16.msra.mxu0 0
    %244 = vmatprep.subr.bf16.mxu0 0
    %245 = vmatpush2.bf16.msra.mxu0 0
    %246 = vmatprep.subr.bf16.mxu0 0
    %247 = vmatpush2.bf16.msra.mxu0 0
    %248 = vmatprep.subr.bf16.mxu0 0
    %249 = vmatpush2.bf16.msra.mxu0 0
    %250 = vmatprep.subr.bf16.mxu0 0
    %251 = vmatpush2.bf16.msra.mxu0 0
    %252 = vmatprep.mubr.bf16.mxu0 0
    %253 = vmatmul.mubr.bf16.gmra.mxu0 %v218
    %v254 = vpop.f32.mrf.mxu0
    %v255 = vadd.f32 %v203, %v254
    %v256 = vpop.f32.mrf.mxu0
    %v257 = vpop.f32.mrf.mxu0
    %v258 = vadd.f32 %v203, %v257
    %v259 = vpop.f32.mrf.mxu0
    %260 = vdwg.mxu0
    %261 = vst [vmem:[%s8] sm:$0xff] %v255
    %262 = vst [vmem:[%s8 + $0x8] sm:$0xff] %v258
  $region41: #{groie_forward.22} parent=0 // pred_fallthru
    _
  // Predicated region
  $region42: #{groie_forward.22} parent=0 // pred_check
    _
  $region43: #{groie_forward.22} parent=0 // pred_check_branch
    %264 = sbr.rel (0) target = $region45
  $region44: #{groie_forward.22} parent=0 // pred_region
    _
  $region45: #{groie_forward.22} parent=0 // pred_fallthru
    _
  // Predicated region
  $region46: #{groie_forward.22} parent=0 // pred_check
    _
  $region47: #{groie_forward.22} parent=0 // pred_check_branch
    %266 = sbr.rel (0) target = $region49
  $region48: #{groie_forward.22} parent=0 // pred_region
    _
  $region49: #{groie_forward.22} parent=0 // pred_fallthru
    _

// kernel: groie_forward.23
$region0: #{groie_forward.23}
  #allocation0 [shape = 'u32[]', space=smem, size = 0x4, offset = 0x4, fixed_abs, tag = 'smem constant byte address 0x4 - core index']
  #allocation1 [shape = 'u32[144,128]{1,0:T(1,128)}', space=vmem, size = 0x12000, scoped, tag = 'internal scratch']
  %s0 = inlined_call_operand.vmem [shape: f32[8,2,4], index: 0, kind: input, shape index: {}]
  %s1 = inlined_call_operand.vmem [shape: f32[8,2,4], index: 1, kind: input, shape index: {}]
  %s2 = inlined_call_operand.vmem [shape: f32[4,4], index: 2, kind: input, shape index: {}]
  %s3 = inlined_call_operand.vmem [shape: f32[1,4], index: 3, kind: input, shape index: {}]
  %s4 = inlined_call_operand.vmem [shape: f32[1,4], index: 4, kind: input, shape index: {}]
  %s5 = inlined_call_operand.vmem [shape: f32[2,1], index: 5, kind: output, shape index: {}]
  %s6 = sld [smem:[#allocation0]]
  $region37: #{groie_forward.23} parent=0
    _
  %s8 = ssub.s32 1, %s6
  %s9 = scalar_select 0, %s8, %s6
  // Predicated region
  $region2: #{groie_forward.23} parent=0 // pred_check
    _
  $region3: #{groie_forward.23} parent=0 // pred_check_branch
    %11 = sbr.rel (0) target = $region5
  $region4: #{groie_forward.23} parent=0 // pred_region
    _
  $region5: #{groie_forward.23} parent=0 // pred_fallthru
    _
  // Predicated region
  $region6: #{groie_forward.23} parent=0 // pred_check
    _
  $region7: #{groie_forward.23} parent=0 // pred_check_branch
    %13 = sbr.rel (0) target = $region9
  $region8: #{groie_forward.23} parent=0 // pred_region
    _
  $region9: #{groie_forward.23} parent=0 // pred_fallthru
    _
  // Predicated region
  $region10: #{groie_forward.23} parent=0 // pred_check
    _
  $region11: #{groie_forward.23} parent=0 // pred_check_branch
    %15 = sbr.rel (0) target = $region13
  $region12: #{groie_forward.23} parent=0 // pred_region
    _
  $region13: #{groie_forward.23} parent=0 // pred_fallthru
    _
  // Predicated region
  $region14: #{groie_forward.23} parent=0 // pred_check
    _
  $region15: #{groie_forward.23} parent=0 // pred_check_branch
    %17 = sbr.rel (0) target = $region17
  $region16: #{groie_forward.23} parent=0 // pred_region
    _
  $region17: #{groie_forward.23} parent=0 // pred_fallthru
    _
  // Predicated region
  $region18: #{groie_forward.23} parent=0 // pred_check
    _
  $region19: #{groie_forward.23} parent=0 // pred_check_branch
    %19 = sbr.rel (0) target = $region21
  $region20: #{groie_forward.23} parent=0 // pred_region
    _
  $region21: #{groie_forward.23} parent=0 // pred_fallthru
    _
  %v20 = vld [vmem:[%s0] sm:$0x3]
  %v21 = vld [vmem:[%s0 + $0x2] sm:$0x3]
  %v22 = vld [vmem:[%s0 + $0x4] sm:$0x3]
  %v23 = vld [vmem:[%s0 + $0x6] sm:$0x3]
  %v24 = vld [vmem:[%s0 + $0x8] sm:$0x3]
  %v25 = vld [vmem:[%s0 + $0xa] sm:$0x3]
  %v26 = vld [vmem:[%s0 + $0xc] sm:$0x3]
  %v27 = vld [vmem:[%s0 + $0xe] sm:$0x3]
  %v28 = vld [vmem:[%s1] sm:$0x3]
  %v29 = vld [vmem:[%s1 + $0x2] sm:$0x3]
  %v30 = vld [vmem:[%s1 + $0x4] sm:$0x3]
  %v31 = vld [vmem:[%s1 + $0x6] sm:$0x3]
  %v32 = vld [vmem:[%s1 + $0x8] sm:$0x3]
  %v33 = vld [vmem:[%s1 + $0xa] sm:$0x3]
  %v34 = vld [vmem:[%s1 + $0xc] sm:$0x3]
  %v35 = vld [vmem:[%s1 + $0xe] sm:$0x3]
  %v36 = vld [vmem:[%s2] sm:$0xf]
  %v37 = vld [vmem:[%s3] sm:$0x1]
  %v38 = vld [vmem:[%s4] sm:$0x1]
  %v39 = vmul.f32 %v20, %v28
  %v40 = vmul.f32 %v21, %v29
  %v41 = vmul.f32 %v22, %v30
  %v42 = vmul.f32 %v23, %v31
  %v43 = vmul.f32 %v24, %v32
  %v44 = vmul.f32 %v25, %v33
  %v45 = vmul.f32 %v26, %v34
  %v46 = vmul.f32 %v27, %v35
  %vm47 = vcmask 25600
  %v48 = vsel %vm47, %v39, 0.0
  %v49 = vsel %vm47, %v40, 0.0
  %v50 = vadd.f32 %v48, %v49
  %v51 = vsel %vm47, %v41, 0.0
  %v52 = vadd.f32 %v50, %v51
  %v53 = vsel %vm47, %v42, 0.0
  %v54 = vadd.f32 %v52, %v53
  %v55 = vsel %vm47, %v43, 0.0
  %v56 = vadd.f32 %v54, %v55
  %v57 = vsel %vm47, %v44, 0.0
  %v58 = vadd.f32 %v56, %v57
  %v59 = vsel %vm47, %v45, 0.0
  %v60 = vadd.f32 %v58, %v59
  %v61 = vsel %vm47, %v46, 0.0
  %v62 = vadd.f32 %v60, %v61
  %v63 = vsel %vm47, %v62, 0.0
  %64 = vadd.xlane.f32.xlu0 %v63
  %v65 = vpop.xlane.xlu0 %64
  %v73 = vcombine.low %v28, %v29
  %v74 = vcombine.low %v30, %v31
  %v76 = vunpack.c.l.s4 1983009808
  %v77 = vunpack.c.0.s8 %v76
  %v78 = vlaneseq
  %v79 = vshrl.u32 %v78, 7
  %v80 = vsub.s32 %v77, %v79
  %v81 = vrot.slane %v73, %v80
  %v83 = vunpack.c.l.s4 1983009808
  %v84 = vunpack.c.0.s8 %v83
  %v85 = vlaneseq
  %v86 = vshrl.u32 %v85, 7
  %v87 = vsub.s32 %v84, %v86
  %v88 = vrot.slane %v74, %v87
  %v89 = vcombine.low %v81, %v88
  %v90 = vcombine.low %v32, %v33
  %v92 = vunpack.c.l.s4 1983009808
  %v93 = vunpack.c.0.s8 %v92
  %v94 = vlaneseq
  %v95 = vshrl.u32 %v94, 7
  %v96 = vsub.s32 %v93, %v95
  %v97 = vrot.slane %v90, %v96
  %v99 = vunpack.c.l.s4 1983009808
  %v100 = vunpack.c.0.s8 %v99
  %v101 = vlaneseq
  %v102 = vshrl.u32 %v101, 7
  %v103 = vsub.s32 %v100, %v102
  %v104 = vrot.slane %v34, %v103
  %v105 = vcombine.low %v97, %v104
  %vm106 = vcmask 31744
  %v107 = vsel %vm106, %v89, 0
  %v109 = vsel %vm106, %v105, 0
  %vm111 = vcmask 1043456
  %v113 = vsel %vm111, %v36, 0
  %115 = vmatprep.subr.mxu0 0.0
  %116 = vmatpush1.msra.mxu0 0.0
  %117 = vmatprep.subr.mxu0 0.0
  %118 = vmatpush1.msra.mxu0 0.0
  %119 = vmatprep.subr.mxu0 0.0
  %120 = vmatpush1.msra.mxu0 0.0
  %121 = vmatprep.subr.mxu0 0.0
  %122 = vmatpush1.msra.mxu0 0.0
  %123 = vmatprep.subr.mxu0 0.0
  %124 = vmatpush1.msra.mxu0 0.0
  %125 = vmatprep.subr.mxu0 0.0
  %126 = vmatpush1.msra.mxu0 0.0
  %127 = vmatprep.subr.mxu0 0.0
  %128 = vmatpush1.msra.mxu0 0.0
  %129 = vmatprep.subr.mxu0 0.0
  %130 = vmatpush1.msra.mxu0 0.0
  %131 = vmatprep.subr.mxu0 0.0
  %132 = vmatpush1.msra.mxu0 0.0
  %133 = vmatprep.subr.mxu0 0.0
  %134 = vmatpush1.msra.mxu0 0.0
  %135 = vmatprep.subr.mxu0 0.0
  %136 = vmatpush1.msra.mxu0 0.0
  %137 = vmatprep.subr.mxu0 0.0
  %138 = vmatpush1.msra.mxu0 0.0
  %139 = vmatprep.subr.mxu0 0.0
  %140 = vmatpush1.msra.mxu0 0.0
  %141 = vmatprep.subr.mxu0 0.0
  %142 = vmatpush1.msra.mxu0 0.0
  %143 = vmatprep.subr.mxu0 0.0
  %144 = vmatpush1.msra.mxu0 0.0
  %145 = vmatprep.subr.mxu0 0.0
  %146 = vmatpush1.msra.mxu0 %v113
  %147 = vmatprep.subr.mxu0 0.0
  %148 = vmatpush2.msra.mxu0 0.0
  %149 = vmatprep.subr.mxu0 0.0
  %150 = vmatpush2.msra.mxu0 0.0
  %151 = vmatprep.subr.mxu0 0.0
  %152 = vmatpush2.msra.mxu0 0.0
  %153 = vmatprep.subr.mxu0 0.0
  %154 = vmatpush2.msra.mxu0 0.0
  %155 = vmatprep.subr.mxu0 0.0
  %156 = vmatpush2.msra.mxu0 0.0
  %157 = vmatprep.subr.mxu0 0.0
  %158 = vmatpush2.msra.mxu0 0.0
  %159 = vmatprep.subr.mxu0 0.0
  %160 = vmatpush2.msra.mxu0 0.0
  %161 = vmatprep.subr.mxu0 0.0
  %162 = vmatpush2.msra.mxu0 0.0
  %163 = vmatprep.subr.mxu0 0.0
  %164 = vmatpush2.msra.mxu0 0.0
  %165 = vmatprep.subr.mxu0 0.0
  %166 = vmatpush2.msra.mxu0 0.0
  %167 = vmatprep.subr.mxu0 0.0
  %168 = vmatpush2.msra.mxu0 0.0
  %169 = vmatprep.subr.mxu0 0.0
  %170 = vmatpush2.msra.mxu0 0.0
  %171 = vmatprep.subr.mxu0 0.0
  %172 = vmatpush2.msra.mxu0 0.0
  %173 = vmatprep.subr.mxu0 0.0
  %174 = vmatpush2.msra.mxu0 0.0
  %175 = vmatprep.subr.mxu0 0.0
  %176 = vmatpush2.msra.mxu0 0.0
  %177 = vmatprep.subr.mxu0 0.0
  %178 = vmatpush2.msra.mxu0 0.0
  %179 = vmatprep.mubr.f32.mxu0 0.0
  %180 = vmatmul.mubr.f32.gmra.mxu0 %v107
  %v181 = vpop.f32.mrf.mxu0
  %v182 = vadd.f32 0.0, %v181
  %v183 = vpop.f32.mrf.mxu0
  %184 = vmatprep.mubr.f32.mxu0 0.0
  %185 = vmatmul.mubr.f32.gmra.mxu0 %v109
  %v186 = vpop.f32.mrf.mxu0
  %v187 = vadd.f32 0.0, %v186
  %v188 = vpop.f32.mrf.mxu0
  %189 = vdwg.mxu0
  %v192 = vcombine.high %v182, %v182
  %v194 = vunpack.c.l.s4 1983009808
  %v195 = vunpack.c.0.s8 %v194
  %v196 = vlaneseq
  %v197 = vshrl.u32 %v196, 7
  %v198 = vsub.s32 %v195, %v197
  %v199 = vrot.slane %v182, %v198
  %v201 = vunpack.c.l.s4 1983009808
  %v202 = vunpack.c.0.s8 %v201
  %v203 = vlaneseq
  %v204 = vshrl.u32 %v203, 7
  %v205 = vsub.s32 %v202, %v204
  %v206 = vrot.slane %v192, %v205
  %v207 = vcombine.high %v199, %v199
  %v208 = vcombine.high %v206, %v206
  %v209 = vcombine.high %v187, %v187
  %v211 = vunpack.c.l.s4 1983009808
  %v212 = vunpack.c.0.s8 %v211
  %v213 = vlaneseq
  %v214 = vshrl.u32 %v213, 7
  %v215 = vsub.s32 %v212, %v214
  %v216 = vrot.slane %v187, %v215
  %v218 = vunpack.c.l.s4 1983009808
  %v219 = vunpack.c.0.s8 %v218
  %v220 = vlaneseq
  %v221 = vshrl.u32 %v220, 7
  %v222 = vsub.s32 %v219, %v221
  %v223 = vrot.slane %v209, %v222
  %v224 = vcombine.high %v216, %v216
  %v232 = vmul.f32 %v199, %v29
  %v233 = vmul.f32 %v207, %v30
  %v234 = vmul.f32 %v206, %v31
  %v235 = vmul.f32 %v208, %v32
  %v236 = vmul.f32 %v216, %v33
  %v237 = vmul.f32 %v224, %v34
  %v238 = vmul.f32 %v223, %v35
  %v239 = vsel %vm47, %v232, 0.0
  %v240 = vsel %vm47, %v233, 0.0
  %v241 = vadd.f32 %v239, %v240
  %v242 = vsel %vm47, %v234, 0.0
  %v243 = vadd.f32 %v241, %v242
  %v244 = vsel %vm47, %v235, 0.0
  %v245 = vadd.f32 %v243, %v244
  %v246 = vsel %vm47, %v236, 0.0
  %v247 = vadd.f32 %v245, %v246
  %v248 = vsel %vm47, %v237, 0.0
  %v249 = vadd.f32 %v247, %v248
  %v250 = vsel %vm47, %v238, 0.0
  %v251 = vadd.f32 %v249, %v250
  %v252 = vsel %vm47, %v251, 0.0
  %253 = vadd.xlane.f32.xlu0 %v252
  %v254 = vpop.xlane.xlu0 %253
  %v256 = vlaneseq
  %v257 = vshrl.u32 %v256, 7
  %v258 = vsub.s32 0, %v257
  %v259 = vrot.slane %v37, %v258
  %v261 = vmul.f32 %v28, %v259
  %v262 = vsel %vm47, %v261, 0.0
  %263 = vadd.xlane.f32.xlu0 %v262
  %v264 = vpop.xlane.xlu0 %263
  %v266 = vlaneseq
  %v267 = vshrl.u32 %v266, 7
  %v268 = vsub.s32 0, %v267
  %v269 = vrot.slane %v38, %v268
  %v271 = vmul.f32 %v35, %v269
  %v272 = vsel %vm47, %v271, 0.0
  %273 = vadd.xlane.f32.xlu0 %v272
  %v274 = vpop.xlane.xlu0 %273
  %v275 = vadd.f32 %v65, %v254
  %v276 = vadd.f32 %v275, %v264
  %v277 = vadd.f32 %v276, %v274
  %278 = vxpose.xlu0.b32.start [1/16] %v36, 128
  %279 = vxpose.xlu0.b32.cont [2/16] 0.0, 128
  %280 = vxpose.xlu0.b32.cont [3/16] 0.0, 128
  %281 = vxpose.xlu0.b32.cont [4/16] 0.0, 128
  %282 = vxpose.xlu0.b32.cont [5/16] 0.0, 128
  %283 = vxpose.xlu0.b32.cont [6/16] 0.0, 128
  %284 = vxpose.xlu0.b32.cont [7/16] 0.0, 128
  %285 = vxpose.xlu0.b32.cont [8/16] 0.0, 128
  %286 = vxpose.xlu0.b32.cont [9/16] 0.0, 128
  %287 = vxpose.xlu0.b32.cont [10/16] 0.0, 128
  %288 = vxpose.xlu0.b32.cont [11/16] 0.0, 128
  %289 = vxpose.xlu0.b32.cont [12/16] 0.0, 128
  %290 = vxpose.xlu0.b32.cont [13/16] 0.0, 128
  %291 = vxpose.xlu0.b32.cont [14/16] 0.0, 128
  %292 = vxpose.xlu0.b32.cont [15/16] 0.0, 128
  %293 = vxpose.xlu0.b32.end [16/16] 0.0, 128
  %v294 = vpop.trf.xlu0
  %v295 = vpop.trf.xlu0
  %v296 = vpop.trf.xlu0
  %v297 = vpop.trf.xlu0
  %v298 = vpop.trf.xlu0
  %v299 = vpop.trf.xlu0
  %v300 = vpop.trf.xlu0
  %v301 = vpop.trf.xlu0
  %v302 = vpop.trf.xlu0
  %v303 = vpop.trf.xlu0
  %v304 = vpop.trf.xlu0
  %v305 = vpop.trf.xlu0
  %v306 = vpop.trf.xlu0
  %v307 = vpop.trf.xlu0
  %v308 = vpop.trf.xlu0
  %v309 = vpop.trf.xlu0
  %v310 = vadd.f32 %v259, %v20
  loop: start=1, step=1, limit=8
  $region22: #{groie_forward.23} parent=0 // loop_pre_header
    _
  $region23: #{groie_forward.23} parent=0 // loop_header
    %s312 = sphi 1, %s316
    %p313 = scmp.ge.s32.totalorder %s312, 8
    %v317 = vphi %v310, %v419
  $region24: #{groie_forward.23} parent=0 // loop_header_branch
    %315 = sbr.rel (%p313) target = $region28
  $region25: #{groie_forward.23} parent=0 // loop_body
    %s318 = smul.u32 %s312, 2
    %s319 = scalar_lea.vmem %s0, %s318
    %v320 = vld [vmem:[%s319] sm:$0x3]
    %v323 = vunpack.c.l.s4 1966171168
    %v324 = vunpack.c.0.s8 %v323
    %v325 = vlaneseq
    %v326 = vshrl.u32 %v325, 7
    %v327 = vsub.s32 %v324, %v326
    %v328 = vrot.slane %v317, %v327
    %v329 = vcombine.high %v328, %v328
    %v331 = vunpack.c.l.s4 1966171168
    %v332 = vunpack.c.0.s8 %v331
    %v333 = vlaneseq
    %v334 = vshrl.u32 %v333, 7
    %v335 = vsub.s32 %v332, %v334
    %v336 = vrot.slane %v328, %v335
    %v338 = vunpack.c.l.s4 1966171168
    %v339 = vunpack.c.0.s8 %v338
    %v340 = vlaneseq
    %v341 = vshrl.u32 %v340, 7
    %v342 = vsub.s32 %v339, %v341
    %v343 = vrot.slane %v329, %v342
    %v344 = vlaneseq
    %v345 = vshrl.u32 %v344, 7
    %v346 = vsub.s32 0, %v345
    %v347 = vrot.slane %v336, %v346
    %v348 = vlaneseq
    %v349 = vshrl.u32 %v348, 7
    %v350 = vsub.s32 0, %v349
    %v351 = vrot.slane %v343, %v350
    %v354 = vadd.f32 %v347, %v294
    %v355 = vadd.f32 %v351, %v294
    %vm356 = vcmask 27648
    %v357 = vsel %vm356, %v354, -inf
    %358 = vmax.xlane.f32.xlu0 %v357
    %v359 = vpop.xlane.xlu0 %358
    %v360 = vsel %vm356, %v355, -inf
    %361 = vmax.xlane.f32.xlu0 %v360
    %v362 = vpop.xlane.xlu0 %361
    %v363 = vsub.f32 %v354, %v359
    %v364 = vsub.f32 %v355, %v362
    %v365 = vmul.f32 %v363, 1.442695
    %v366 = vpow.pop %v365
    %v367 = vmul.f32 %v364, 1.442695
    %v368 = vpow.pop %v367
    %v369 = vsel %vm356, %v366, 0.0
    %370 = vadd.xlane.f32.xlu0 %v369
    %v371 = vpop.xlane.xlu0 %370
    %v372 = vsel %vm356, %v368, 0.0
    %373 = vadd.xlane.f32.xlu0 %v372
    %v374 = vpop.xlane.xlu0 %373
    %v375 = vlog2.pop %v371
    %v376 = vmul.f32 %v375, 0.6931472
    %v377 = vlog2.pop %v374
    %v378 = vmul.f32 %v377, 0.6931472
    %v379 = vadd.f32 %v359, %v376
    %v380 = vadd.f32 %v362, %v378
    %v382 = vlaneseq
    %v383 = vshrl.u32 %v382, 7
    %v384 = vsub.s32 0, %v383
    %v385 = vrot.slane %v320, %v384
    %387 = vbcast.lane.b32.xlu0 %v385, 256
    %v388 = vpop.permute.xlu0 %387
    %v389 = vlaneseq
    %v390 = vshrl.u32 %v389, 7
    %v391 = vsub.s32 1, %v390
    %v392 = vrot.slane %v320, %v391
    %394 = vbcast.lane.b32.xlu0 %v392, 256
    %v395 = vpop.permute.xlu0 %394
    %v398 = vadd.f32 %v379, %v388
    %v399 = vadd.f32 %v380, %v395
    %402 = vset.pattern.permute.xlu0 0
    %403 = vperm.xlu0 %402, %v398
    %v404 = vpop.permute.xlu0 %403
    %405 = vset.pattern.permute.xlu0 0
    %406 = vperm.xlu0 %405, %v399
    %v407 = vpop.permute.xlu0 %406
    %v408 = vlaneseq
    %v409 = vand.u32 %v408, 127
    %v410 = vlaneseq
    %v411 = vshrl.u32 %v410, 7
    %v412 = vsub.s32 %v409, %v411
    %v413 = vrot.slane %v404, %v412
    %v414 = vlaneseq
    %v415 = vshrl.u32 %v414, 7
    %v416 = vsub.s32 %v409, %v415
    %v417 = vrot.slane %v407, %v416
    %vm418 = vcmask 1041409
    %v419 = vsel %vm418, %v417, %v413
  $region26: #{groie_forward.23} parent=0 // loop_footer
    %s316 = sadd.s32 1, %s312
  $region27: #{groie_forward.23} parent=0 // loop_footer_branch
    %311 = sbr.rel target = $region23
  $region28: #{groie_forward.23} parent=0 // loop_exit
    _
  %v421 = vadd.f32 %v317, %v269
  %v422 = vsel %vm47, %v421, -inf
  %423 = vmax.xlane.f32.xlu0 %v422
  %v424 = vpop.xlane.xlu0 %423
  %v425 = vsub.f32 %v421, %v424
  %v426 = vmul.f32 %v425, 1.442695
  %v427 = vpow.pop %v426
  %v428 = vsel %vm47, %v427, 0.0
  %429 = vadd.xlane.f32.xlu0 %v428
  %v430 = vpop.xlane.xlu0 %429
  %v431 = vlog2.pop %v430
  %v432 = vmul.f32 %v431, 0.6931472
  %v433 = vadd.f32 %v424, %v432
  %v434 = vsub.f32 %v277, %v433
  %vm435 = vcmask 1024
  %436 = vst.msk [vmem:[%s5] sm:$0x3] %vm435, %v434
  // Predicated region
  $region29: #{groie_forward.23} parent=0 // pred_check
    _
  $region30: #{groie_forward.23} parent=0 // pred_check_branch
    %438 = sbr.rel (0) target = $region32
  $region31: #{groie_forward.23} parent=0 // pred_region
    _
  $region32: #{groie_forward.23} parent=0 // pred_fallthru
    _
  // Predicated region
  $region33: #{groie_forward.23} parent=0 // pred_check
    _
  $region34: #{groie_forward.23} parent=0 // pred_check_branch
    %440 = sbr.rel (0) target = $region36
  $region35: #{groie_forward.23} parent=0 // pred_region
    _
  $region36: #{groie_forward.23} parent=0 // pred_fallthru
    _

</llo_original>
